<compile_context>
chip_gen: v6e
topology: v6e:2x2x1
jax: 0.10.0
libtpu: 0.0.40
codegen_flags: <defaults>
</compile_context>

<pallas_src>
import jax
import jax.numpy as jnp
import numpy as np
from jax import lax
from jax.experimental import pallas as pl
from jax.experimental.pallas import tpu as pltpu


# ----------------------------- Pallas kernel ------------------------------- #
def _make_bilstm_kernel(T, B, H):
    """Builds the kernel closed over static shape parameters."""
    H2 = 2 * H
    G8 = 8 * H
    TB = T * B
    f32 = jnp.float32
    bf16 = jnp.bfloat16

    def kernel(x_ref, lens_ref, steps_ref,
               wih_ref, whh_ref, b_ref, wf_ref, wb_ref, blin_ref,
               out_ref, hall_ref):
        # (1) Hoisted input projection for BOTH directions: one bf16 MXU matmul.
        #     Gate columns interleaved per gate: [i_f,i_b,f_f,f_b,g_f,g_b,o_f,o_b].
        xg_all = (jnp.dot(x_ref[...], wih_ref[...],
                          preferred_element_type=f32)
                  + b_ref[...])                                    # (T*B, 8H) f32

        # Hoisted constant column masks (computed once; loop body only slices).
        gc = lax.broadcasted_iota(jnp.int32, (B, G8), 1)
        fwd_gate_cols = (gc % H2) < H                              # fwd gate columns
        g_cols = (gc >= 4 * H) & (gc < 6 * H)                      # tanh (g) columns

        # Hoisted pad-mask table: row r = s*B + b. Fwd half valid iff lens[b] > s,
        # bwd half (processing time T-1-s) valid iff lens[b] > T-1-s.
        col = lax.broadcasted_iota(jnp.int32, (TB, H2), 1)
        thresh = jnp.where(col < H, steps_ref[...], (T - 1) - steps_ref[...])
        mask_all = lens_ref[...] > thresh                          # (T*B, 2H) bool

        whh = whh_ref[...]                                         # (2H, 8H) bf16
        h = jnp.zeros((B, H2), f32)                                # [h_fwd | h_bwd]
        c = jnp.zeros((B, H2), f32)

        # (2) Fused fwd+bwd recurrence, fully unrolled; one small bf16 recurrent
        #     matmul per step covers both directions (2H <= 128: zero block free).
        for s in range(T):
            # fwd gate columns use x_s, bwd gate columns use x_{T-1-s}
            xg = jnp.where(fwd_gate_cols,
                           xg_all[s * B:(s + 1) * B, :],
                           xg_all[(T - 1 - s) * B:(T - s) * B, :])
            gates = (jnp.dot(h.astype(bf16), whh, preferred_element_type=f32)
                     + xg)                                         # (B, 8H) f32
            # one full-width sigmoid + one full-width tanh + one select
            act = jnp.where(g_cols, jnp.tanh(gates), jax.nn.sigmoid(gates))
            i = act[:, 0 * H2:1 * H2]                              # [i_f, i_b]
            f = act[:, 1 * H2:2 * H2]                              # [f_f, f_b]
            g = act[:, 2 * H2:3 * H2]                              # [g_f, g_b]
            o = act[:, 3 * H2:4 * H2]                              # [o_f, o_b]
            c_new = f * c + i * g
            h_new = o * jnp.tanh(c_new)

            # pack_padded_sequence semantics: freeze state / zero outputs on pads.
            m = mask_all[s * B:(s + 1) * B, :]                     # static slice
            h = jnp.where(m, h_new, h)
            c = jnp.where(m, c_new, c)
            # single full-width (B, 2H) store per step, natural row order:
            # row block s of hall = [h_f(s) | h_b(T-1-s)]
            hall_ref[s * B:(s + 1) * B, :] = jnp.where(m, h_new, 0.0)

        # (3) Output projection: two bf16 matmuls off the critical recurrence.
        #     The bwd-half time reversal is folded into full-lane row-block adds;
        #     the tag dim is padded to 128 lanes so every store is unmasked.
        hall = hall_ref[...].astype(bf16)                          # (T*B, 2H)
        out_f = (jnp.dot(hall, wf_ref[...], preferred_element_type=f32)
                 + blin_ref[...])                                  # rows ordered by time s
        out_b = jnp.dot(hall, wb_ref[...], preferred_element_type=f32)  # rows by time T-1-s
        for t in range(T):
            out_ref[t * B:(t + 1) * B, :] = (out_f[t * B:(t + 1) * B, :]
                                             + out_b[(T - 1 - t) * B:(T - t) * B, :])

    return kernel


# ------------------------ weight re-layout helpers -------------------------- #
def _interleave_gate_cols(wf, wb, H):
    """Interleave per-gate columns of two (..., 4H) mats -> (..., 8H),
    column order: [i_f, i_b, f_f, f_b, g_f, g_b, o_f, o_b]."""
    parts = []
    for g in range(4):
        parts.append(wf[..., g * H:(g + 1) * H])
        parts.append(wb[..., g * H:(g + 1) * H])
    return jnp.concatenate(parts, axis=-1)


# ------------------------------ wrapper ------------------------------------ #
def bilstm_forward(word_seq_tensor, word_seq_lens, params):
    """word_seq_tensor: (B, T) int32 ids; word_seq_lens: (B,) int32."""
    B, T = word_seq_tensor.shape
    D = params['embedding'].shape[1]
    H = params['whh_f'].shape[0]
    K = params['wlin'].shape[1]
    Kp = ((K + 127) // 128) * 128             # lane-dense padded tag dimension
    TB, H2 = T * B, 2 * H
    f32, bf16 = jnp.float32, jnp.bfloat16

    # glue: embedding gather directly in time-major order (no extra transpose pass),
    # word dropout is identity (eval). Matmul operand cast to bf16.
    x_flat = params['embedding'][word_seq_tensor.T].reshape(TB, D).astype(bf16)

    lens_rows = jnp.tile(word_seq_lens.reshape(B, 1).astype(jnp.int32), (T, 1))   # (T*B, 1)
    steps_rows = jnp.repeat(jnp.arange(T, dtype=jnp.int32), B).reshape(TB, 1)     # (T*B, 1)

    # one-time weight re-layout (done once in JAX, outside the kernel):
    wih_all = _interleave_gate_cols(params['wih_f'].astype(f32),
                                    params['wih_b'].astype(f32), H).astype(bf16)  # (D, 8H)
    zH = jnp.zeros((H, 4 * H), f32)
    whh_comb = _interleave_gate_cols(
        jnp.concatenate([params['whh_f'].astype(f32), zH], axis=0),
        jnp.concatenate([zH, params['whh_b'].astype(f32)], axis=0),
        H).astype(bf16)                                                           # (2H, 8H)
    b_comb = _interleave_gate_cols(params['b_f'].astype(f32),
                                   params['b_b'].astype(f32), H)                  # (1, 8H) f32

    wlin = params['wlin'].astype(f32)
    wf_pad = jnp.zeros((H2, Kp), f32).at[:H, :K].set(wlin[:H]).astype(bf16)       # fwd half
    wb_pad = jnp.zeros((H2, Kp), f32).at[H:, :K].set(wlin[H:]).astype(bf16)       # bwd half
    blin_pad = jnp.zeros((1, Kp), f32).at[:, :K].set(params['blin'].astype(f32))

    vmem = pl.BlockSpec(memory_space=pltpu.MemorySpace.VMEM)
    kernel = _make_bilstm_kernel(T, B, H)
    out_pad = pl.pallas_call(
        kernel,
        out_shape=jax.ShapeDtypeStruct((TB, Kp), f32),
        in_specs=[vmem] * 9,
        out_specs=vmem,
        scratch_shapes=[pltpu.VMEM((TB, H2), f32)],   # natural-order [h_fwd | h_bwd(rev)]
        compiler_params=pltpu.CompilerParams(vmem_limit_bytes=32 * 1024 * 1024),
    )(x_flat, lens_rows, steps_rows, wih_all, whh_comb, b_comb, wf_pad, wb_pad, blin_pad)

    out = out_pad[:, :K].reshape(T, B, K)             # strip lane padding
    return jnp.transpose(out, (1, 0, 2))              # (B, T, tag_size)


# ------------------------- pure-JAX reference ------------------------------ #
def reference_forward(word_seq_tensor, word_seq_lens, p):
    emb = p['embedding'][word_seq_tensor].astype(jnp.float32)      # (B, T, D)
    B, T, _ = emb.shape
    H = p['whh_f'].shape[0]

    def run_dir(wih, whh, b, reverse):
        h = jnp.zeros((B, H), jnp.float32)
        c = jnp.zeros((B, H), jnp.float32)
        out = jnp.zeros((B, T, H), jnp.float32)
        order = range(T - 1, -1, -1) if reverse else range(T)
        for t in order:
            x_t = emb[:, t, :]
            gates = x_t @ wih + h @ whh + b
            i = jax.nn.sigmoid(gates[:, 0:H])
            f = jax.nn.sigmoid(gates[:, H:2 * H])
            g = jnp.tanh(gates[:, 2 * H:3 * H])
            o = jax.nn.sigmoid(gates[:, 3 * H:4 * H])
            c_new = f * c + i * g
            h_new = o * jnp.tanh(c_new)
            mask = word_seq_lens[:, None] > t
            h = jnp.where(mask, h_new, h)
            c = jnp.where(mask, c_new, c)
            out = out.at[:, t, :].set(jnp.where(mask, h_new, 0.0))
        return out

    hf = run_dir(p['wih_f'], p['whh_f'], p['b_f'], reverse=False)
    hb = run_dir(p['wih_b'], p['whh_b'], p['b_b'], reverse=True)
    hcat = jnp.concatenate([hf, hb], axis=-1)
    return hcat @ p['wlin'] + p['blin'][0]


# ------------------------------- main --------------------------------------- #
if __name__ == "__main__":
    # small config consistent with the module (B padded to a full 8-row sublane)
    vocab_size = 50
    tag_size = 8
    embedding_dim = 32
    hidden_dim = 32                  # bidirectional => hidden_dim // 2 per direction
    H = hidden_dim // 2
    B, T = 8, 8

    key = jax.random.PRNGKey(0)
    ks = jax.random.split(key, 12)
    u = lambda k, shape: jax.random.uniform(k, shape, jnp.float32, -0.1, 0.1)

    params = {
        'embedding': u(ks[0], (vocab_size, embedding_dim)),
        # LSTM weights (already transposed to (in, 4H) / (H, 4H); bias = b_ih + b_hh)
        'wih_f': u(ks[1], (embedding_dim, 4 * H)),
        'whh_f': u(ks[2], (H, 4 * H)),
        'b_f':   u(ks[3], (1, 4 * H)),
        'wih_b': u(ks[4], (embedding_dim, 4 * H)),
        'whh_b': u(ks[5], (H, 4 * H)),
        'b_b':   u(ks[6], (1, 4 * H)),
        # final linear: (hidden_dim, tag_size), bias (1, tag_size)
        'wlin':  u(ks[7], (hidden_dim, tag_size)),
        'blin':  u(ks[8], (1, tag_size)),
    }

    word_seq_tensor = jax.random.randint(ks[9], (B, T), 0, vocab_size, dtype=jnp.int32)
    word_seq_lens = jnp.array([T, 5, 7, 3, T, 2, 6, 4], dtype=jnp.int32)  # packed-seq path

    out = bilstm_forward(word_seq_tensor, word_seq_lens, params)
    out = jax.block_until_ready(out)

    ref = jax.block_until_ready(reference_forward(word_seq_tensor, word_seq_lens, params))
    assert out.shape == (B, T, tag_size)
    np.testing.assert_allclose(np.asarray(out), np.asarray(ref), rtol=2e-2, atol=2e-3)

    print("KERNEL_OK")
</pallas_src>

<mosaic_0001>
module attributes {stable_mosaic.version = 11 : i64} {
  func.func @kernel(%arg0: memref<64x32xbf16, #tpu.memory_space<vmem>>, %arg1: memref<64x1xi32, #tpu.memory_space<vmem>>, %arg2: memref<64x1xi32, #tpu.memory_space<vmem>>, %arg3: memref<32x128xbf16, #tpu.memory_space<vmem>>, %arg4: memref<32x128xbf16, #tpu.memory_space<vmem>>, %arg5: memref<1x128xf32, #tpu.memory_space<vmem>>, %arg6: memref<32x128xbf16, #tpu.memory_space<vmem>>, %arg7: memref<32x128xbf16, #tpu.memory_space<vmem>>, %arg8: memref<1x128xf32, #tpu.memory_space<vmem>>, %arg9: memref<64x128xf32, #tpu.memory_space<vmem>>, %arg10: memref<64x32xf32, #tpu.memory_space<vmem>>) attributes {dimension_semantics = [], scalar_prefetch = 0 : i64, scratch_operands = 1 : i64, tpu.core_type = #tpu.core_type<tc>} {
    %c0 = arith.constant 0 : index
    %c0_0 = arith.constant 0 : index
    %0 = vector.load %arg0[%c0, %c0_0] : memref<64x32xbf16, #tpu.memory_space<vmem>>, vector<64x32xbf16>
    %c0_1 = arith.constant 0 : index
    %c0_2 = arith.constant 0 : index
    %1 = vector.load %arg3[%c0_1, %c0_2] : memref<32x128xbf16, #tpu.memory_space<vmem>>, vector<32x128xbf16>
    %cst = arith.constant dense<0.000000e+00> : vector<64x128xf32>
    %2 = tpu.matmul %0, %1, %cst {dimension_numbers = #tpu.dot_dimension_numbers<[1], [0], [0], [1], [0, 0, 1, 1], [], []>} : vector<64x32xbf16>, vector<32x128xbf16>, vector<64x128xf32> -> vector<64x128xf32>
    %c0_3 = arith.constant 0 : index
    %c0_4 = arith.constant 0 : index
    %3 = vector.load %arg5[%c0_3, %c0_4] : memref<1x128xf32, #tpu.memory_space<vmem>>, vector<1x128xf32>
    %4 = vector.broadcast %3 : vector<1x128xf32> to vector<64x128xf32>
    %5 = arith.addf %2, %4 : vector<64x128xf32>
    %6 = tpu.iota {dimensions = array<i32: 1>} : vector<8x128xi32>
    %c32_i32 = arith.constant 32 : i32
    %c0_i32 = arith.constant 0 : i32
    %7 = arith.cmpi eq, %c32_i32, %c0_i32 : i32
    %c1_i32 = arith.constant 1 : i32
    %8 = arith.select %7, %c1_i32, %c32_i32 : i32
    %9 = vector.broadcast %8 : i32 to vector<8x128xi32>
    %10 = arith.remsi %6, %9 : vector<8x128xi32>
    %c0_i32_5 = arith.constant 0 : i32
    %11 = vector.broadcast %c0_i32_5 : i32 to vector<8x128xi32>
    %12 = arith.cmpi ne, %10, %11 : vector<8x128xi32>
    %c0_i32_6 = arith.constant 0 : i32
    %13 = vector.broadcast %c0_i32_6 : i32 to vector<8x128xi32>
    %14 = arith.cmpi slt, %10, %13 : vector<8x128xi32>
    %c0_i32_7 = arith.constant 0 : i32
    %15 = arith.cmpi slt, %8, %c0_i32_7 : i32
    %16 = vector.broadcast %15 : i1 to vector<8x128xi1>
    %17 = vector.broadcast %16 : vector<8x128xi1> to vector<8x128xi1>
    %18 = arith.xori %14, %17 : vector<8x128xi1>
    %19 = arith.andi %18, %12 : vector<8x128xi1>
    %20 = vector.broadcast %8 : i32 to vector<8x128xi32>
    %21 = arith.addi %10, %20 : vector<8x128xi32>
    %22 = arith.select %19, %21, %10 : vector<8x128xi1>, vector<8x128xi32>
    %c16_i32 = arith.constant 16 : i32
    %23 = vector.broadcast %c16_i32 : i32 to vector<8x128xi32>
    %24 = arith.cmpi slt, %22, %23 : vector<8x128xi32>
    %c64_i32 = arith.constant 64 : i32
    %25 = vector.broadcast %c64_i32 : i32 to vector<8x128xi32>
    %26 = arith.cmpi sge, %6, %25 : vector<8x128xi32>
    %c96_i32 = arith.constant 96 : i32
    %27 = vector.broadcast %c96_i32 : i32 to vector<8x128xi32>
    %28 = arith.cmpi slt, %6, %27 : vector<8x128xi32>
    %29 = arith.andi %26, %28 : vector<8x128xi1>
    %30 = tpu.iota {dimensions = array<i32: 1>} : vector<64x32xi32>
    %c16_i32_8 = arith.constant 16 : i32
    %31 = vector.broadcast %c16_i32_8 : i32 to vector<64x32xi32>
    %32 = arith.cmpi slt, %30, %31 : vector<64x32xi32>
    %c0_9 = arith.constant 0 : index
    %c0_10 = arith.constant 0 : index
    %33 = vector.load %arg2[%c0_9, %c0_10] : memref<64x1xi32, #tpu.memory_space<vmem>>, vector<64x1xi32>
    %c0_11 = arith.constant 0 : index
    %c0_12 = arith.constant 0 : index
    %34 = vector.load %arg2[%c0_11, %c0_12] : memref<64x1xi32, #tpu.memory_space<vmem>>, vector<64x1xi32>
    %c7_i32 = arith.constant 7 : i32
    %35 = vector.broadcast %c7_i32 : i32 to vector<64x1xi32>
    %36 = arith.subi %35, %34 : vector<64x1xi32>
    %37 = vector.shape_cast %33 : vector<64x1xi32> to vector<64x1xi32>
    %38 = vector.broadcast %37 : vector<64x1xi32> to vector<64x32xi32>
    %39 = vector.shape_cast %36 : vector<64x1xi32> to vector<64x1xi32>
    %40 = vector.broadcast %39 : vector<64x1xi32> to vector<64x32xi32>
    %41 = arith.select %32, %38, %40 : vector<64x32xi1>, vector<64x32xi32>
    %c0_13 = arith.constant 0 : index
    %c0_14 = arith.constant 0 : index
    %42 = vector.load %arg1[%c0_13, %c0_14] : memref<64x1xi32, #tpu.memory_space<vmem>>, vector<64x1xi32>
    %43 = vector.broadcast %42 : vector<64x1xi32> to vector<64x32xi32>
    %44 = arith.cmpi sgt, %43, %41 : vector<64x32xi32>
    %c0_15 = arith.constant 0 : index
    %c0_16 = arith.constant 0 : index
    %45 = vector.load %arg4[%c0_15, %c0_16] : memref<32x128xbf16, #tpu.memory_space<vmem>>, vector<32x128xbf16>
    %cst_17 = arith.constant 0.000000e+00 : f32
    %46 = vector.broadcast %cst_17 : f32 to vector<8x32xf32>
    %cst_18 = arith.constant 0.000000e+00 : f32
    %47 = vector.broadcast %cst_18 : f32 to vector<8x32xf32>
    %48 = vector.extract_strided_slice %5 {offsets = [0, 0], sizes = [8, 128], strides = [1, 1]} : vector<64x128xf32> to vector<8x128xf32>
    %49 = vector.extract_strided_slice %5 {offsets = [56, 0], sizes = [8, 128], strides = [1, 1]} : vector<64x128xf32> to vector<8x128xf32>
    %50 = arith.select %24, %48, %49 : vector<8x128xi1>, vector<8x128xf32>
    %51 = arith.truncf %46 : vector<8x32xf32> to vector<8x32xbf16>
    %cst_19 = arith.constant dense<0.000000e+00> : vector<8x128xf32>
    %52 = tpu.matmul %51, %45, %cst_19 {dimension_numbers = #tpu.dot_dimension_numbers<[1], [0], [0], [1], [0, 0, 1, 1], [], []>} : vector<8x32xbf16>, vector<32x128xbf16>, vector<8x128xf32> -> vector<8x128xf32>
    %53 = arith.addf %52, %50 : vector<8x128xf32>
    %54 = math.tanh %53 : vector<8x128xf32>
    %55 = arith.negf %53 : vector<8x128xf32>
    %56 = math.exp %55 : vector<8x128xf32>
    %cst_20 = arith.constant 1.000000e+00 : f32
    %57 = vector.broadcast %cst_20 : f32 to vector<8x128xf32>
    %58 = arith.addf %57, %56 : vector<8x128xf32>
    %59 = arith.divf %57, %58 : vector<8x128xf32>
    %60 = arith.select %29, %54, %59 : vector<8x128xi1>, vector<8x128xf32>
    %61 = vector.extract_strided_slice %60 {offsets = [0, 0], sizes = [8, 32], strides = [1, 1]} : vector<8x128xf32> to vector<8x32xf32>
    %62 = vector.extract_strided_slice %60 {offsets = [0, 32], sizes = [8, 32], strides = [1, 1]} : vector<8x128xf32> to vector<8x32xf32>
    %63 = vector.extract_strided_slice %60 {offsets = [0, 64], sizes = [8, 32], strides = [1, 1]} : vector<8x128xf32> to vector<8x32xf32>
    %64 = vector.extract_strided_slice %60 {offsets = [0, 96], sizes = [8, 32], strides = [1, 1]} : vector<8x128xf32> to vector<8x32xf32>
    %65 = arith.mulf %62, %47 : vector<8x32xf32>
    %66 = arith.mulf %61, %63 : vector<8x32xf32>
    %67 = arith.addf %65, %66 : vector<8x32xf32>
    %68 = math.tanh %67 : vector<8x32xf32>
    %69 = arith.mulf %64, %68 : vector<8x32xf32>
    %70 = vector.extract_strided_slice %44 {offsets = [0, 0], sizes = [8, 32], strides = [1, 1]} : vector<64x32xi1> to vector<8x32xi1>
    %71 = arith.select %70, %69, %46 : vector<8x32xi1>, vector<8x32xf32>
    %72 = arith.select %70, %67, %47 : vector<8x32xi1>, vector<8x32xf32>
    %cst_21 = arith.constant 0.000000e+00 : f32
    %73 = vector.broadcast %cst_21 : f32 to vector<8x32xf32>
    %74 = arith.select %70, %69, %73 : vector<8x32xi1>, vector<8x32xf32>
    %c0_22 = arith.constant 0 : index
    %c0_23 = arith.constant 0 : index
    %75 = vector.load %arg10[%c0_22, %c0_23] : memref<64x32xf32, #tpu.memory_space<vmem>>, vector<8x32xf32>
    tpu.vector_store %arg10[%c0_22, %c0_23], %74 {strides = array<i32>} : memref<64x32xf32, #tpu.memory_space<vmem>>, vector<8x32xf32>,
    %76 = vector.extract_strided_slice %5 {offsets = [8, 0], sizes = [8, 128], strides = [1, 1]} : vector<64x128xf32> to vector<8x128xf32>
    %77 = vector.extract_strided_slice %5 {offsets = [48, 0], sizes = [8, 128], strides = [1, 1]} : vector<64x128xf32> to vector<8x128xf32>
    %78 = arith.select %24, %76, %77 : vector<8x128xi1>, vector<8x128xf32>
    %79 = arith.truncf %71 : vector<8x32xf32> to vector<8x32xbf16>
    %cst_24 = arith.constant dense<0.000000e+00> : vector<8x128xf32>
    %80 = tpu.matmul %79, %45, %cst_24 {dimension_numbers = #tpu.dot_dimension_numbers<[1], [0], [0], [1], [0, 0, 1, 1], [], []>} : vector<8x32xbf16>, vector<32x128xbf16>, vector<8x128xf32> -> vector<8x128xf32>
    %81 = arith.addf %80, %78 : vector<8x128xf32>
    %82 = math.tanh %81 : vector<8x128xf32>
    %83 = arith.negf %81 : vector<8x128xf32>
    %84 = math.exp %83 : vector<8x128xf32>
    %cst_25 = arith.constant 1.000000e+00 : f32
    %85 = vector.broadcast %cst_25 : f32 to vector<8x128xf32>
    %86 = arith.addf %85, %84 : vector<8x128xf32>
    %87 = arith.divf %85, %86 : vector<8x128xf32>
    %88 = arith.select %29, %82, %87 : vector<8x128xi1>, vector<8x128xf32>
    %89 = vector.extract_strided_slice %88 {offsets = [0, 0], sizes = [8, 32], strides = [1, 1]} : vector<8x128xf32> to vector<8x32xf32>
    %90 = vector.extract_strided_slice %88 {offsets = [0, 32], sizes = [8, 32], strides = [1, 1]} : vector<8x128xf32> to vector<8x32xf32>
    %91 = vector.extract_strided_slice %88 {offsets = [0, 64], sizes = [8, 32], strides = [1, 1]} : vector<8x128xf32> to vector<8x32xf32>
    %92 = vector.extract_strided_slice %88 {offsets = [0, 96], sizes = [8, 32], strides = [1, 1]} : vector<8x128xf32> to vector<8x32xf32>
    %93 = arith.mulf %90, %72 : vector<8x32xf32>
    %94 = arith.mulf %89, %91 : vector<8x32xf32>
    %95 = arith.addf %93, %94 : vector<8x32xf32>
    %96 = math.tanh %95 : vector<8x32xf32>
    %97 = arith.mulf %92, %96 : vector<8x32xf32>
    %98 = vector.extract_strided_slice %44 {offsets = [8, 0], sizes = [8, 32], strides = [1, 1]} : vector<64x32xi1> to vector<8x32xi1>
    %99 = arith.select %98, %97, %71 : vector<8x32xi1>, vector<8x32xf32>
    %100 = arith.select %98, %95, %72 : vector<8x32xi1>, vector<8x32xf32>
    %cst_26 = arith.constant 0.000000e+00 : f32
    %101 = vector.broadcast %cst_26 : f32 to vector<8x32xf32>
    %102 = arith.select %98, %97, %101 : vector<8x32xi1>, vector<8x32xf32>
    %c8 = arith.constant 8 : index
    %c0_27 = arith.constant 0 : index
    %103 = vector.load %arg10[%c8, %c0_27] : memref<64x32xf32, #tpu.memory_space<vmem>>, vector<8x32xf32>
    tpu.vector_store %arg10[%c8, %c0_27], %102 {strides = array<i32>} : memref<64x32xf32, #tpu.memory_space<vmem>>, vector<8x32xf32>,
    %104 = vector.extract_strided_slice %5 {offsets = [16, 0], sizes = [8, 128], strides = [1, 1]} : vector<64x128xf32> to vector<8x128xf32>
    %105 = vector.extract_strided_slice %5 {offsets = [40, 0], sizes = [8, 128], strides = [1, 1]} : vector<64x128xf32> to vector<8x128xf32>
    %106 = arith.select %24, %104, %105 : vector<8x128xi1>, vector<8x128xf32>
    %107 = arith.truncf %99 : vector<8x32xf32> to vector<8x32xbf16>
    %cst_28 = arith.constant dense<0.000000e+00> : vector<8x128xf32>
    %108 = tpu.matmul %107, %45, %cst_28 {dimension_numbers = #tpu.dot_dimension_numbers<[1], [0], [0], [1], [0, 0, 1, 1], [], []>} : vector<8x32xbf16>, vector<32x128xbf16>, vector<8x128xf32> -> vector<8x128xf32>
    %109 = arith.addf %108, %106 : vector<8x128xf32>
    %110 = math.tanh %109 : vector<8x128xf32>
    %111 = arith.negf %109 : vector<8x128xf32>
    %112 = math.exp %111 : vector<8x128xf32>
    %cst_29 = arith.constant 1.000000e+00 : f32
    %113 = vector.broadcast %cst_29 : f32 to vector<8x128xf32>
    %114 = arith.addf %113, %112 : vector<8x128xf32>
    %115 = arith.divf %113, %114 : vector<8x128xf32>
    %116 = arith.select %29, %110, %115 : vector<8x128xi1>, vector<8x128xf32>
    %117 = vector.extract_strided_slice %116 {offsets = [0, 0], sizes = [8, 32], strides = [1, 1]} : vector<8x128xf32> to vector<8x32xf32>
    %118 = vector.extract_strided_slice %116 {offsets = [0, 32], sizes = [8, 32], strides = [1, 1]} : vector<8x128xf32> to vector<8x32xf32>
    %119 = vector.extract_strided_slice %116 {offsets = [0, 64], sizes = [8, 32], strides = [1, 1]} : vector<8x128xf32> to vector<8x32xf32>
    %120 = vector.extract_strided_slice %116 {offsets = [0, 96], sizes = [8, 32], strides = [1, 1]} : vector<8x128xf32> to vector<8x32xf32>
    %121 = arith.mulf %118, %100 : vector<8x32xf32>
    %122 = arith.mulf %117, %119 : vector<8x32xf32>
    %123 = arith.addf %121, %122 : vector<8x32xf32>
    %124 = math.tanh %123 : vector<8x32xf32>
    %125 = arith.mulf %120, %124 : vector<8x32xf32>
    %126 = vector.extract_strided_slice %44 {offsets = [16, 0], sizes = [8, 32], strides = [1, 1]} : vector<64x32xi1> to vector<8x32xi1>
    %127 = arith.select %126, %125, %99 : vector<8x32xi1>, vector<8x32xf32>
    %128 = arith.select %126, %123, %100 : vector<8x32xi1>, vector<8x32xf32>
    %cst_30 = arith.constant 0.000000e+00 : f32
    %129 = vector.broadcast %cst_30 : f32 to vector<8x32xf32>
    %130 = arith.select %126, %125, %129 : vector<8x32xi1>, vector<8x32xf32>
    %c16 = arith.constant 16 : index
    %c0_31 = arith.constant 0 : index
    %131 = vector.load %arg10[%c16, %c0_31] : memref<64x32xf32, #tpu.memory_space<vmem>>, vector<8x32xf32>
    tpu.vector_store %arg10[%c16, %c0_31], %130 {strides = array<i32>} : memref<64x32xf32, #tpu.memory_space<vmem>>, vector<8x32xf32>,
    %132 = vector.extract_strided_slice %5 {offsets = [24, 0], sizes = [8, 128], strides = [1, 1]} : vector<64x128xf32> to vector<8x128xf32>
    %133 = vector.extract_strided_slice %5 {offsets = [32, 0], sizes = [8, 128], strides = [1, 1]} : vector<64x128xf32> to vector<8x128xf32>
    %134 = arith.select %24, %132, %133 : vector<8x128xi1>, vector<8x128xf32>
    %135 = arith.truncf %127 : vector<8x32xf32> to vector<8x32xbf16>
    %cst_32 = arith.constant dense<0.000000e+00> : vector<8x128xf32>
    %136 = tpu.matmul %135, %45, %cst_32 {dimension_numbers = #tpu.dot_dimension_numbers<[1], [0], [0], [1], [0, 0, 1, 1], [], []>} : vector<8x32xbf16>, vector<32x128xbf16>, vector<8x128xf32> -> vector<8x128xf32>
    %137 = arith.addf %136, %134 : vector<8x128xf32>
    %138 = math.tanh %137 : vector<8x128xf32>
    %139 = arith.negf %137 : vector<8x128xf32>
    %140 = math.exp %139 : vector<8x128xf32>
    %cst_33 = arith.constant 1.000000e+00 : f32
    %141 = vector.broadcast %cst_33 : f32 to vector<8x128xf32>
    %142 = arith.addf %141, %140 : vector<8x128xf32>
    %143 = arith.divf %141, %142 : vector<8x128xf32>
    %144 = arith.select %29, %138, %143 : vector<8x128xi1>, vector<8x128xf32>
    %145 = vector.extract_strided_slice %144 {offsets = [0, 0], sizes = [8, 32], strides = [1, 1]} : vector<8x128xf32> to vector<8x32xf32>
    %146 = vector.extract_strided_slice %144 {offsets = [0, 32], sizes = [8, 32], strides = [1, 1]} : vector<8x128xf32> to vector<8x32xf32>
    %147 = vector.extract_strided_slice %144 {offsets = [0, 64], sizes = [8, 32], strides = [1, 1]} : vector<8x128xf32> to vector<8x32xf32>
    %148 = vector.extract_strided_slice %144 {offsets = [0, 96], sizes = [8, 32], strides = [1, 1]} : vector<8x128xf32> to vector<8x32xf32>
    %149 = arith.mulf %146, %128 : vector<8x32xf32>
    %150 = arith.mulf %145, %147 : vector<8x32xf32>
    %151 = arith.addf %149, %150 : vector<8x32xf32>
    %152 = math.tanh %151 : vector<8x32xf32>
    %153 = arith.mulf %148, %152 : vector<8x32xf32>
    %154 = vector.extract_strided_slice %44 {offsets = [24, 0], sizes = [8, 32], strides = [1, 1]} : vector<64x32xi1> to vector<8x32xi1>
    %155 = arith.select %154, %153, %127 : vector<8x32xi1>, vector<8x32xf32>
    %156 = arith.select %154, %151, %128 : vector<8x32xi1>, vector<8x32xf32>
    %cst_34 = arith.constant 0.000000e+00 : f32
    %157 = vector.broadcast %cst_34 : f32 to vector<8x32xf32>
    %158 = arith.select %154, %153, %157 : vector<8x32xi1>, vector<8x32xf32>
    %c24 = arith.constant 24 : index
    %c0_35 = arith.constant 0 : index
    %159 = vector.load %arg10[%c24, %c0_35] : memref<64x32xf32, #tpu.memory_space<vmem>>, vector<8x32xf32>
    tpu.vector_store %arg10[%c24, %c0_35], %158 {strides = array<i32>} : memref<64x32xf32, #tpu.memory_space<vmem>>, vector<8x32xf32>,
    %160 = vector.extract_strided_slice %5 {offsets = [32, 0], sizes = [8, 128], strides = [1, 1]} : vector<64x128xf32> to vector<8x128xf32>
    %161 = vector.extract_strided_slice %5 {offsets = [24, 0], sizes = [8, 128], strides = [1, 1]} : vector<64x128xf32> to vector<8x128xf32>
    %162 = arith.select %24, %160, %161 : vector<8x128xi1>, vector<8x128xf32>
    %163 = arith.truncf %155 : vector<8x32xf32> to vector<8x32xbf16>
    %cst_36 = arith.constant dense<0.000000e+00> : vector<8x128xf32>
    %164 = tpu.matmul %163, %45, %cst_36 {dimension_numbers = #tpu.dot_dimension_numbers<[1], [0], [0], [1], [0, 0, 1, 1], [], []>} : vector<8x32xbf16>, vector<32x128xbf16>, vector<8x128xf32> -> vector<8x128xf32>
    %165 = arith.addf %164, %162 : vector<8x128xf32>
    %166 = math.tanh %165 : vector<8x128xf32>
    %167 = arith.negf %165 : vector<8x128xf32>
    %168 = math.exp %167 : vector<8x128xf32>
    %cst_37 = arith.constant 1.000000e+00 : f32
    %169 = vector.broadcast %cst_37 : f32 to vector<8x128xf32>
    %170 = arith.addf %169, %168 : vector<8x128xf32>
    %171 = arith.divf %169, %170 : vector<8x128xf32>
    %172 = arith.select %29, %166, %171 : vector<8x128xi1>, vector<8x128xf32>
    %173 = vector.extract_strided_slice %172 {offsets = [0, 0], sizes = [8, 32], strides = [1, 1]} : vector<8x128xf32> to vector<8x32xf32>
    %174 = vector.extract_strided_slice %172 {offsets = [0, 32], sizes = [8, 32], strides = [1, 1]} : vector<8x128xf32> to vector<8x32xf32>
    %175 = vector.extract_strided_slice %172 {offsets = [0, 64], sizes = [8, 32], strides = [1, 1]} : vector<8x128xf32> to vector<8x32xf32>
    %176 = vector.extract_strided_slice %172 {offsets = [0, 96], sizes = [8, 32], strides = [1, 1]} : vector<8x128xf32> to vector<8x32xf32>
    %177 = arith.mulf %174, %156 : vector<8x32xf32>
    %178 = arith.mulf %173, %175 : vector<8x32xf32>
    %179 = arith.addf %177, %178 : vector<8x32xf32>
    %180 = math.tanh %179 : vector<8x32xf32>
    %181 = arith.mulf %176, %180 : vector<8x32xf32>
    %182 = vector.extract_strided_slice %44 {offsets = [32, 0], sizes = [8, 32], strides = [1, 1]} : vector<64x32xi1> to vector<8x32xi1>
    %183 = arith.select %182, %181, %155 : vector<8x32xi1>, vector<8x32xf32>
    %184 = arith.select %182, %179, %156 : vector<8x32xi1>, vector<8x32xf32>
    %cst_38 = arith.constant 0.000000e+00 : f32
    %185 = vector.broadcast %cst_38 : f32 to vector<8x32xf32>
    %186 = arith.select %182, %181, %185 : vector<8x32xi1>, vector<8x32xf32>
    %c32 = arith.constant 32 : index
    %c0_39 = arith.constant 0 : index
    %187 = vector.load %arg10[%c32, %c0_39] : memref<64x32xf32, #tpu.memory_space<vmem>>, vector<8x32xf32>
    tpu.vector_store %arg10[%c32, %c0_39], %186 {strides = array<i32>} : memref<64x32xf32, #tpu.memory_space<vmem>>, vector<8x32xf32>,
    %188 = vector.extract_strided_slice %5 {offsets = [40, 0], sizes = [8, 128], strides = [1, 1]} : vector<64x128xf32> to vector<8x128xf32>
    %189 = vector.extract_strided_slice %5 {offsets = [16, 0], sizes = [8, 128], strides = [1, 1]} : vector<64x128xf32> to vector<8x128xf32>
    %190 = arith.select %24, %188, %189 : vector<8x128xi1>, vector<8x128xf32>
    %191 = arith.truncf %183 : vector<8x32xf32> to vector<8x32xbf16>
    %cst_40 = arith.constant dense<0.000000e+00> : vector<8x128xf32>
    %192 = tpu.matmul %191, %45, %cst_40 {dimension_numbers = #tpu.dot_dimension_numbers<[1], [0], [0], [1], [0, 0, 1, 1], [], []>} : vector<8x32xbf16>, vector<32x128xbf16>, vector<8x128xf32> -> vector<8x128xf32>
    %193 = arith.addf %192, %190 : vector<8x128xf32>
    %194 = math.tanh %193 : vector<8x128xf32>
    %195 = arith.negf %193 : vector<8x128xf32>
    %196 = math.exp %195 : vector<8x128xf32>
    %cst_41 = arith.constant 1.000000e+00 : f32
    %197 = vector.broadcast %cst_41 : f32 to vector<8x128xf32>
    %198 = arith.addf %197, %196 : vector<8x128xf32>
    %199 = arith.divf %197, %198 : vector<8x128xf32>
    %200 = arith.select %29, %194, %199 : vector<8x128xi1>, vector<8x128xf32>
    %201 = vector.extract_strided_slice %200 {offsets = [0, 0], sizes = [8, 32], strides = [1, 1]} : vector<8x128xf32> to vector<8x32xf32>
    %202 = vector.extract_strided_slice %200 {offsets = [0, 32], sizes = [8, 32], strides = [1, 1]} : vector<8x128xf32> to vector<8x32xf32>
    %203 = vector.extract_strided_slice %200 {offsets = [0, 64], sizes = [8, 32], strides = [1, 1]} : vector<8x128xf32> to vector<8x32xf32>
    %204 = vector.extract_strided_slice %200 {offsets = [0, 96], sizes = [8, 32], strides = [1, 1]} : vector<8x128xf32> to vector<8x32xf32>
    %205 = arith.mulf %202, %184 : vector<8x32xf32>
    %206 = arith.mulf %201, %203 : vector<8x32xf32>
    %207 = arith.addf %205, %206 : vector<8x32xf32>
    %208 = math.tanh %207 : vector<8x32xf32>
    %209 = arith.mulf %204, %208 : vector<8x32xf32>
    %210 = vector.extract_strided_slice %44 {offsets = [40, 0], sizes = [8, 32], strides = [1, 1]} : vector<64x32xi1> to vector<8x32xi1>
    %211 = arith.select %210, %209, %183 : vector<8x32xi1>, vector<8x32xf32>
    %212 = arith.select %210, %207, %184 : vector<8x32xi1>, vector<8x32xf32>
    %cst_42 = arith.constant 0.000000e+00 : f32
    %213 = vector.broadcast %cst_42 : f32 to vector<8x32xf32>
    %214 = arith.select %210, %209, %213 : vector<8x32xi1>, vector<8x32xf32>
    %c40 = arith.constant 40 : index
    %c0_43 = arith.constant 0 : index
    %215 = vector.load %arg10[%c40, %c0_43] : memref<64x32xf32, #tpu.memory_space<vmem>>, vector<8x32xf32>
    tpu.vector_store %arg10[%c40, %c0_43], %214 {strides = array<i32>} : memref<64x32xf32, #tpu.memory_space<vmem>>, vector<8x32xf32>,
    %216 = vector.extract_strided_slice %5 {offsets = [48, 0], sizes = [8, 128], strides = [1, 1]} : vector<64x128xf32> to vector<8x128xf32>
    %217 = vector.extract_strided_slice %5 {offsets = [8, 0], sizes = [8, 128], strides = [1, 1]} : vector<64x128xf32> to vector<8x128xf32>
    %218 = arith.select %24, %216, %217 : vector<8x128xi1>, vector<8x128xf32>
    %219 = arith.truncf %211 : vector<8x32xf32> to vector<8x32xbf16>
    %cst_44 = arith.constant dense<0.000000e+00> : vector<8x128xf32>
    %220 = tpu.matmul %219, %45, %cst_44 {dimension_numbers = #tpu.dot_dimension_numbers<[1], [0], [0], [1], [0, 0, 1, 1], [], []>} : vector<8x32xbf16>, vector<32x128xbf16>, vector<8x128xf32> -> vector<8x128xf32>
    %221 = arith.addf %220, %218 : vector<8x128xf32>
    %222 = math.tanh %221 : vector<8x128xf32>
    %223 = arith.negf %221 : vector<8x128xf32>
    %224 = math.exp %223 : vector<8x128xf32>
    %cst_45 = arith.constant 1.000000e+00 : f32
    %225 = vector.broadcast %cst_45 : f32 to vector<8x128xf32>
    %226 = arith.addf %225, %224 : vector<8x128xf32>
    %227 = arith.divf %225, %226 : vector<8x128xf32>
    %228 = arith.select %29, %222, %227 : vector<8x128xi1>, vector<8x128xf32>
    %229 = vector.extract_strided_slice %228 {offsets = [0, 0], sizes = [8, 32], strides = [1, 1]} : vector<8x128xf32> to vector<8x32xf32>
    %230 = vector.extract_strided_slice %228 {offsets = [0, 32], sizes = [8, 32], strides = [1, 1]} : vector<8x128xf32> to vector<8x32xf32>
    %231 = vector.extract_strided_slice %228 {offsets = [0, 64], sizes = [8, 32], strides = [1, 1]} : vector<8x128xf32> to vector<8x32xf32>
    %232 = vector.extract_strided_slice %228 {offsets = [0, 96], sizes = [8, 32], strides = [1, 1]} : vector<8x128xf32> to vector<8x32xf32>
    %233 = arith.mulf %230, %212 : vector<8x32xf32>
    %234 = arith.mulf %229, %231 : vector<8x32xf32>
    %235 = arith.addf %233, %234 : vector<8x32xf32>
    %236 = math.tanh %235 : vector<8x32xf32>
    %237 = arith.mulf %232, %236 : vector<8x32xf32>
    %238 = vector.extract_strided_slice %44 {offsets = [48, 0], sizes = [8, 32], strides = [1, 1]} : vector<64x32xi1> to vector<8x32xi1>
    %239 = arith.select %238, %237, %211 : vector<8x32xi1>, vector<8x32xf32>
    %240 = arith.select %238, %235, %212 : vector<8x32xi1>, vector<8x32xf32>
    %cst_46 = arith.constant 0.000000e+00 : f32
    %241 = vector.broadcast %cst_46 : f32 to vector<8x32xf32>
    %242 = arith.select %238, %237, %241 : vector<8x32xi1>, vector<8x32xf32>
    %c48 = arith.constant 48 : index
    %c0_47 = arith.constant 0 : index
    %243 = vector.load %arg10[%c48, %c0_47] : memref<64x32xf32, #tpu.memory_space<vmem>>, vector<8x32xf32>
    tpu.vector_store %arg10[%c48, %c0_47], %242 {strides = array<i32>} : memref<64x32xf32, #tpu.memory_space<vmem>>, vector<8x32xf32>,
    %244 = vector.extract_strided_slice %5 {offsets = [56, 0], sizes = [8, 128], strides = [1, 1]} : vector<64x128xf32> to vector<8x128xf32>
    %245 = vector.extract_strided_slice %5 {offsets = [0, 0], sizes = [8, 128], strides = [1, 1]} : vector<64x128xf32> to vector<8x128xf32>
    %246 = arith.select %24, %244, %245 : vector<8x128xi1>, vector<8x128xf32>
    %247 = arith.truncf %239 : vector<8x32xf32> to vector<8x32xbf16>
    %cst_48 = arith.constant dense<0.000000e+00> : vector<8x128xf32>
    %248 = tpu.matmul %247, %45, %cst_48 {dimension_numbers = #tpu.dot_dimension_numbers<[1], [0], [0], [1], [0, 0, 1, 1], [], []>} : vector<8x32xbf16>, vector<32x128xbf16>, vector<8x128xf32> -> vector<8x128xf32>
    %249 = arith.addf %248, %246 : vector<8x128xf32>
    %250 = math.tanh %249 : vector<8x128xf32>
    %251 = arith.negf %249 : vector<8x128xf32>
    %252 = math.exp %251 : vector<8x128xf32>
    %cst_49 = arith.constant 1.000000e+00 : f32
    %253 = vector.broadcast %cst_49 : f32 to vector<8x128xf32>
    %254 = arith.addf %253, %252 : vector<8x128xf32>
    %255 = arith.divf %253, %254 : vector<8x128xf32>
    %256 = arith.select %29, %250, %255 : vector<8x128xi1>, vector<8x128xf32>
    %257 = vector.extract_strided_slice %256 {offsets = [0, 0], sizes = [8, 32], strides = [1, 1]} : vector<8x128xf32> to vector<8x32xf32>
    %258 = vector.extract_strided_slice %256 {offsets = [0, 32], sizes = [8, 32], strides = [1, 1]} : vector<8x128xf32> to vector<8x32xf32>
    %259 = vector.extract_strided_slice %256 {offsets = [0, 64], sizes = [8, 32], strides = [1, 1]} : vector<8x128xf32> to vector<8x32xf32>
    %260 = vector.extract_strided_slice %256 {offsets = [0, 96], sizes = [8, 32], strides = [1, 1]} : vector<8x128xf32> to vector<8x32xf32>
    %261 = arith.mulf %258, %240 : vector<8x32xf32>
    %262 = arith.mulf %257, %259 : vector<8x32xf32>
    %263 = arith.addf %261, %262 : vector<8x32xf32>
    %264 = math.tanh %263 : vector<8x32xf32>
    %265 = arith.mulf %260, %264 : vector<8x32xf32>
    %266 = vector.extract_strided_slice %44 {offsets = [56, 0], sizes = [8, 32], strides = [1, 1]} : vector<64x32xi1> to vector<8x32xi1>
    %cst_50 = arith.constant 0.000000e+00 : f32
    %267 = vector.broadcast %cst_50 : f32 to vector<8x32xf32>
    %268 = arith.select %266, %265, %267 : vector<8x32xi1>, vector<8x32xf32>
    %c56 = arith.constant 56 : index
    %c0_51 = arith.constant 0 : index
    %269 = vector.load %arg10[%c56, %c0_51] : memref<64x32xf32, #tpu.memory_space<vmem>>, vector<8x32xf32>
    tpu.vector_store %arg10[%c56, %c0_51], %268 {strides = array<i32>} : memref<64x32xf32, #tpu.memory_space<vmem>>, vector<8x32xf32>,
    %c0_52 = arith.constant 0 : index
    %c0_53 = arith.constant 0 : index
    %270 = vector.load %arg10[%c0_52, %c0_53] : memref<64x32xf32, #tpu.memory_space<vmem>>, vector<64x32xf32>
    %271 = arith.truncf %270 : vector<64x32xf32> to vector<64x32xbf16>
    %c0_54 = arith.constant 0 : index
    %c0_55 = arith.constant 0 : index
    %272 = vector.load %arg6[%c0_54, %c0_55] : memref<32x128xbf16, #tpu.memory_space<vmem>>, vector<32x128xbf16>
    %cst_56 = arith.constant dense<0.000000e+00> : vector<64x128xf32>
    %273 = tpu.matmul %271, %272, %cst_56 {dimension_numbers = #tpu.dot_dimension_numbers<[1], [0], [0], [1], [0, 0, 1, 1], [], []>} : vector<64x32xbf16>, vector<32x128xbf16>, vector<64x128xf32> -> vector<64x128xf32>
    %c0_57 = arith.constant 0 : index
    %c0_58 = arith.constant 0 : index
    %274 = vector.load %arg8[%c0_57, %c0_58] : memref<1x128xf32, #tpu.memory_space<vmem>>, vector<1x128xf32>
    %275 = vector.broadcast %274 : vector<1x128xf32> to vector<64x128xf32>
    %276 = arith.addf %273, %275 : vector<64x128xf32>
    %c0_59 = arith.constant 0 : index
    %c0_60 = arith.constant 0 : index
    %277 = vector.load %arg7[%c0_59, %c0_60] : memref<32x128xbf16, #tpu.memory_space<vmem>>, vector<32x128xbf16>
    %cst_61 = arith.constant dense<0.000000e+00> : vector<64x128xf32>
    %278 = tpu.matmul %271, %277, %cst_61 {dimension_numbers = #tpu.dot_dimension_numbers<[1], [0], [0], [1], [0, 0, 1, 1], [], []>} : vector<64x32xbf16>, vector<32x128xbf16>, vector<64x128xf32> -> vector<64x128xf32>
    %279 = vector.extract_strided_slice %276 {offsets = [0, 0], sizes = [8, 128], strides = [1, 1]} : vector<64x128xf32> to vector<8x128xf32>
    %280 = vector.extract_strided_slice %278 {offsets = [56, 0], sizes = [8, 128], strides = [1, 1]} : vector<64x128xf32> to vector<8x128xf32>
    %281 = arith.addf %279, %280 : vector<8x128xf32>
    %c0_62 = arith.constant 0 : index
    %c0_63 = arith.constant 0 : index
    %282 = vector.load %arg9[%c0_62, %c0_63] : memref<64x128xf32, #tpu.memory_space<vmem>>, vector<8x128xf32>
    tpu.vector_store %arg9[%c0_62, %c0_63], %281 {strides = array<i32>} : memref<64x128xf32, #tpu.memory_space<vmem>>, vector<8x128xf32>,
    %283 = vector.extract_strided_slice %276 {offsets = [8, 0], sizes = [8, 128], strides = [1, 1]} : vector<64x128xf32> to vector<8x128xf32>
    %284 = vector.extract_strided_slice %278 {offsets = [48, 0], sizes = [8, 128], strides = [1, 1]} : vector<64x128xf32> to vector<8x128xf32>
    %285 = arith.addf %283, %284 : vector<8x128xf32>
    %c8_64 = arith.constant 8 : index
    %c0_65 = arith.constant 0 : index
    %286 = vector.load %arg9[%c8_64, %c0_65] : memref<64x128xf32, #tpu.memory_space<vmem>>, vector<8x128xf32>
    tpu.vector_store %arg9[%c8_64, %c0_65], %285 {strides = array<i32>} : memref<64x128xf32, #tpu.memory_space<vmem>>, vector<8x128xf32>,
    %287 = vector.extract_strided_slice %276 {offsets = [16, 0], sizes = [8, 128], strides = [1, 1]} : vector<64x128xf32> to vector<8x128xf32>
    %288 = vector.extract_strided_slice %278 {offsets = [40, 0], sizes = [8, 128], strides = [1, 1]} : vector<64x128xf32> to vector<8x128xf32>
    %289 = arith.addf %287, %288 : vector<8x128xf32>
    %c16_66 = arith.constant 16 : index
    %c0_67 = arith.constant 0 : index
    %290 = vector.load %arg9[%c16_66, %c0_67] : memref<64x128xf32, #tpu.memory_space<vmem>>, vector<8x128xf32>
    tpu.vector_store %arg9[%c16_66, %c0_67], %289 {strides = array<i32>} : memref<64x128xf32, #tpu.memory_space<vmem>>, vector<8x128xf32>,
    %291 = vector.extract_strided_slice %276 {offsets = [24, 0], sizes = [8, 128], strides = [1, 1]} : vector<64x128xf32> to vector<8x128xf32>
    %292 = vector.extract_strided_slice %278 {offsets = [32, 0], sizes = [8, 128], strides = [1, 1]} : vector<64x128xf32> to vector<8x128xf32>
    %293 = arith.addf %291, %292 : vector<8x128xf32>
    %c24_68 = arith.constant 24 : index
    %c0_69 = arith.constant 0 : index
    %294 = vector.load %arg9[%c24_68, %c0_69] : memref<64x128xf32, #tpu.memory_space<vmem>>, vector<8x128xf32>
    tpu.vector_store %arg9[%c24_68, %c0_69], %293 {strides = array<i32>} : memref<64x128xf32, #tpu.memory_space<vmem>>, vector<8x128xf32>,
    %295 = vector.extract_strided_slice %276 {offsets = [32, 0], sizes = [8, 128], strides = [1, 1]} : vector<64x128xf32> to vector<8x128xf32>
    %296 = vector.extract_strided_slice %278 {offsets = [24, 0], sizes = [8, 128], strides = [1, 1]} : vector<64x128xf32> to vector<8x128xf32>
    %297 = arith.addf %295, %296 : vector<8x128xf32>
    %c32_70 = arith.constant 32 : index
    %c0_71 = arith.constant 0 : index
    %298 = vector.load %arg9[%c32_70, %c0_71] : memref<64x128xf32, #tpu.memory_space<vmem>>, vector<8x128xf32>
    tpu.vector_store %arg9[%c32_70, %c0_71], %297 {strides = array<i32>} : memref<64x128xf32, #tpu.memory_space<vmem>>, vector<8x128xf32>,
    %299 = vector.extract_strided_slice %276 {offsets = [40, 0], sizes = [8, 128], strides = [1, 1]} : vector<64x128xf32> to vector<8x128xf32>
    %300 = vector.extract_strided_slice %278 {offsets = [16, 0], sizes = [8, 128], strides = [1, 1]} : vector<64x128xf32> to vector<8x128xf32>
    %301 = arith.addf %299, %300 : vector<8x128xf32>
    %c40_72 = arith.constant 40 : index
    %c0_73 = arith.constant 0 : index
    %302 = vector.load %arg9[%c40_72, %c0_73] : memref<64x128xf32, #tpu.memory_space<vmem>>, vector<8x128xf32>
    tpu.vector_store %arg9[%c40_72, %c0_73], %301 {strides = array<i32>} : memref<64x128xf32, #tpu.memory_space<vmem>>, vector<8x128xf32>,
    %303 = vector.extract_strided_slice %276 {offsets = [48, 0], sizes = [8, 128], strides = [1, 1]} : vector<64x128xf32> to vector<8x128xf32>
    %304 = vector.extract_strided_slice %278 {offsets = [8, 0], sizes = [8, 128], strides = [1, 1]} : vector<64x128xf32> to vector<8x128xf32>
    %305 = arith.addf %303, %304 : vector<8x128xf32>
    %c48_74 = arith.constant 48 : index
    %c0_75 = arith.constant 0 : index
    %306 = vector.load %arg9[%c48_74, %c0_75] : memref<64x128xf32, #tpu.memory_space<vmem>>, vector<8x128xf32>
    tpu.vector_store %arg9[%c48_74, %c0_75], %305 {strides = array<i32>} : memref<64x128xf32, #tpu.memory_space<vmem>>, vector<8x128xf32>,
    %307 = vector.extract_strided_slice %276 {offsets = [56, 0], sizes = [8, 128], strides = [1, 1]} : vector<64x128xf32> to vector<8x128xf32>
    %308 = vector.extract_strided_slice %278 {offsets = [0, 0], sizes = [8, 128], strides = [1, 1]} : vector<64x128xf32> to vector<8x128xf32>
    %309 = arith.addf %307, %308 : vector<8x128xf32>
    %c56_76 = arith.constant 56 : index
    %c0_77 = arith.constant 0 : index
    %310 = vector.load %arg9[%c56_76, %c0_77] : memref<64x128xf32, #tpu.memory_space<vmem>>, vector<8x128xf32>
    tpu.vector_store %arg9[%c56_76, %c0_77], %309 {strides = array<i32>} : memref<64x128xf32, #tpu.memory_space<vmem>>, vector<8x128xf32>,
    return
  }
}

</mosaic_0001>

<llo_original>
// kernel: tpu_custom_call.1
$region0: #{tpu_custom_call.1}
  #allocation0 [shape = 'u32[]', space=smem, size = 0x4, offset = 0x4, fixed_abs, tag = 'smem constant byte address 0x4 - core index']
  #allocation1 [shape = 'u32[144,128]{1,0:T(1,128)}', space=vmem, size = 0x12000, scoped, tag = 'internal scratch']
  #allocation2 [shape = 'f32[64,32]{1,0:T(8,128)}', space=vmem, size = 0x8000, scoped, tag = 'scratch operand']
  %s0 = inlined_call_operand.vmem [shape: bf16[64,32], index: 0, kind: input, shape index: {}]
  %s1 = inlined_call_operand.vmem [shape: s32[64,1], index: 1, kind: input, shape index: {}]
  %s2 = inlined_call_operand.vmem [shape: s32[64,1], index: 2, kind: input, shape index: {}]
  %s3 = inlined_call_operand.vmem [shape: bf16[32,128], index: 3, kind: input, shape index: {}]
  %s4 = inlined_call_operand.vmem [shape: bf16[32,128], index: 4, kind: input, shape index: {}]
  %s5 = inlined_call_operand.vmem [shape: f32[1,128], index: 5, kind: input, shape index: {}]
  %s6 = inlined_call_operand.vmem [shape: bf16[32,128], index: 6, kind: input, shape index: {}]
  %s7 = inlined_call_operand.vmem [shape: bf16[32,128], index: 7, kind: input, shape index: {}]
  %s8 = inlined_call_operand.vmem [shape: f32[1,128], index: 8, kind: input, shape index: {}]
  %s9 = inlined_call_operand.hbm [shape: f32[64,128], index: 9, kind: output, shape index: {}]
  %s10 = sld [smem:[#allocation0]]
  $region46: #{tpu_custom_call.1} parent=0
    _
  %s12 = ssub.s32 1, %s10
  %s13 = scalar_select 0, %s12, %s10
  $region1: #{tpu_custom_call.1} parent=0
    #allocation3 [shape = 'u8[32768]{0}', space=vmem, size = 0x8000, scoped, tag = 'output window, operand 0, single buffered']
    #allocation4 [shape = 's32[1]{0}', space=sflag, size = 0x4, scoped, tag = 'scoped memory for tpu_custom_call.1']
    %14 = vsyncpa [#allocation4], 0
    // Predicated region
    $region2: #{tpu_custom_call.1} parent=1 // pred_check
      _
    $region3: #{tpu_custom_call.1} parent=1 // pred_check_branch
      %16 = sbr.rel (0) target = $region5
    $region4: #{tpu_custom_call.1} parent=1 // pred_region
      _
    $region5: #{tpu_custom_call.1} parent=1 // pred_fallthru
      _
    // Predicated region
    $region6: #{tpu_custom_call.1} parent=1 // pred_check
      _
    $region7: #{tpu_custom_call.1} parent=1 // pred_check_branch
      %18 = sbr.rel (0) target = $region9
    $region8: #{tpu_custom_call.1} parent=1 // pred_region
      _
    $region9: #{tpu_custom_call.1} parent=1 // pred_fallthru
      _
    // Predicated region
    $region10: #{tpu_custom_call.1} parent=1 // pred_check
      _
    $region11: #{tpu_custom_call.1} parent=1 // pred_check_branch
      %20 = sbr.rel (0) target = $region13
    $region12: #{tpu_custom_call.1} parent=1 // pred_region
      _
    $region13: #{tpu_custom_call.1} parent=1 // pred_fallthru
      _
    // Predicated region
    $region14: #{tpu_custom_call.1} parent=1 // pred_check
      _
    $region15: #{tpu_custom_call.1} parent=1 // pred_check_branch
      %22 = sbr.rel (0) target = $region17
    $region16: #{tpu_custom_call.1} parent=1 // pred_region
      _
    $region17: #{tpu_custom_call.1} parent=1 // pred_fallthru
      _
    // Predicated region
    $region18: #{tpu_custom_call.1} parent=1 // pred_check
      _
    $region19: #{tpu_custom_call.1} parent=1 // pred_check_branch
      %24 = sbr.rel (0) target = $region21
    $region20: #{tpu_custom_call.1} parent=1 // pred_region
      _
    $region21: #{tpu_custom_call.1} parent=1 // pred_fallthru
      _
    // Predicated region
    $region22: #{tpu_custom_call.1} parent=1 // pred_check
      _
    $region23: #{tpu_custom_call.1} parent=1 // pred_check_branch
      %26 = sbr.rel (0) target = $region25
    $region24: #{tpu_custom_call.1} parent=1 // pred_region
      _
    $region25: #{tpu_custom_call.1} parent=1 // pred_fallthru
      _
    // Predicated region
    $region26: #{tpu_custom_call.1} parent=1 // pred_check
      _
    $region27: #{tpu_custom_call.1} parent=1 // pred_check_branch
      %28 = sbr.rel (0) target = $region29
    $region28: #{tpu_custom_call.1} parent=1 // pred_region
      _
    $region29: #{tpu_custom_call.1} parent=1 // pred_fallthru
      _
    // Predicated region
    $region30: #{tpu_custom_call.1} parent=1 // pred_check
      _
    $region31: #{tpu_custom_call.1} parent=1 // pred_check_branch
      %30 = sbr.rel (0) target = $region33
    $region32: #{tpu_custom_call.1} parent=1 // pred_region
      _
    $region33: #{tpu_custom_call.1} parent=1 // pred_fallthru
      _
    // Predicated region
    $region34: #{tpu_custom_call.1} parent=1 // pred_check
      _
    $region35: #{tpu_custom_call.1} parent=1 // pred_check_branch
      %32 = sbr.rel (0) target = $region37
    $region36: #{tpu_custom_call.1} parent=1 // pred_region
      _
    $region37: #{tpu_custom_call.1} parent=1 // pred_fallthru
      _
    %v34 = vld [vmem:[%s0] sm:$0xf]
    %v35 = vld [vmem:[%s0 + $0x4] sm:$0xf]
    %v36 = vld [vmem:[%s0 + $0x8] sm:$0xf]
    %v37 = vld [vmem:[%s0 + $0xc] sm:$0xf]
    %v38 = vld [vmem:[%s0 + $0x10] sm:$0xf]
    %v39 = vld [vmem:[%s0 + $0x14] sm:$0xf]
    %v40 = vld [vmem:[%s0 + $0x18] sm:$0xf]
    %v41 = vld [vmem:[%s0 + $0x1c] sm:$0xf]
    %v42 = vld [vmem:[%s3] sm:$0xf]
    %v43 = vld [vmem:[%s3 + $0x4] sm:$0xf]
    %v44 = vld [vmem:[%s3 + $0x8] sm:$0xf]
    %v45 = vld [vmem:[%s3 + $0xc] sm:$0xf]
    %v46 = vld [vmem:[%s5] sm:$0x1]
    %v48 = vlaneseq
    %v49 = vshrl.u32 %v48, 7
    %v50 = vsub.s32 0, %v49
    %v51 = vrot.slane %v46, %v50
    %v61 = vunpack.c.l.b16 %v34
    %v62 = vunpack.c.l.b16 %v35
    %v63 = vunpack.c.l.b16 %v36
    %v64 = vunpack.c.l.b16 %v37
    %v65 = vunpack.c.l.b16 %v38
    %v66 = vunpack.c.l.b16 %v39
    %v67 = vunpack.c.l.b16 %v40
    %v68 = vunpack.c.l.b16 %v41
    %v69 = vpack.c.b16 %v62, %v61
    %v70 = vpack.c.b16 %v64, %v63
    %v71 = vpack.c.b16 %v66, %v65
    %v72 = vpack.c.b16 %v68, %v67
    %v77 = vunpack.c.l.b16 %v42
    %v78 = vunpack.c.l.b16 %v43
    %v79 = vunpack.c.l.b16 %v44
    %v80 = vunpack.c.l.b16 %v45
    %v81 = vpack.c.b16 %v78, %v77
    %v82 = vpack.c.b16 %v80, %v79
    %vm85 = vcmask 261120
    %v87 = vsel %vm85, %v69, 0
    %v90 = vsel %vm85, %v70, 0
    %v93 = vsel %vm85, %v71, 0
    %v96 = vsel %vm85, %v72, 0
    %98 = vmatprep.subr.bf16.mxu0 0
    %99 = vmatpush1.bf16.msra.mxu0 0
    %100 = vmatprep.subr.bf16.mxu0 0
    %101 = vmatpush1.bf16.msra.mxu0 0
    %102 = vmatprep.subr.bf16.mxu0 0
    %103 = vmatpush1.bf16.msra.mxu0 0
    %104 = vmatprep.subr.bf16.mxu0 0
    %105 = vmatpush1.bf16.msra.mxu0 0
    %106 = vmatprep.subr.bf16.mxu0 0
    %107 = vmatpush1.bf16.msra.mxu0 0
    %108 = vmatprep.subr.bf16.mxu0 0
    %109 = vmatpush1.bf16.msra.mxu0 0
    %110 = vmatprep.subr.bf16.mxu0 0
    %111 = vmatpush1.bf16.msra.mxu0 %v82
    %112 = vmatprep.subr.bf16.mxu0 0
    %113 = vmatpush1.bf16.msra.mxu0 %v81
    %114 = vmatprep.subr.bf16.mxu0 0
    %115 = vmatpush2.bf16.msra.mxu0 0
    %116 = vmatprep.subr.bf16.mxu0 0
    %117 = vmatpush2.bf16.msra.mxu0 0
    %118 = vmatprep.subr.bf16.mxu0 0
    %119 = vmatpush2.bf16.msra.mxu0 0
    %120 = vmatprep.subr.bf16.mxu0 0
    %121 = vmatpush2.bf16.msra.mxu0 0
    %122 = vmatprep.subr.bf16.mxu0 0
    %123 = vmatpush2.bf16.msra.mxu0 0
    %124 = vmatprep.subr.bf16.mxu0 0
    %125 = vmatpush2.bf16.msra.mxu0 0
    %126 = vmatprep.subr.bf16.mxu0 0
    %127 = vmatpush2.bf16.msra.mxu0 0
    %128 = vmatprep.subr.bf16.mxu0 0
    %129 = vmatpush2.bf16.msra.mxu0 0
    %130 = vmatprep.mubr.bf16.mxu0 0
    %131 = vmatmul.mubr.bf16.gmra.mxu0 %v87
    %v132 = vpop.f32.mrf.mxu0
    %v133 = vadd.f32 %v51, %v132
    %v134 = vpop.f32.mrf.mxu0
    %v135 = vpop.f32.mrf.mxu0
    %v136 = vadd.f32 %v51, %v135
    %v137 = vpop.f32.mrf.mxu0
    %138 = vmatprep.mubr.bf16.mxu0 0
    %139 = vmatmul.mubr.bf16.gmra.mxu0 %v90
    %v140 = vpop.f32.mrf.mxu0
    %v141 = vadd.f32 %v51, %v140
    %v142 = vpop.f32.mrf.mxu0
    %v143 = vpop.f32.mrf.mxu0
    %v144 = vadd.f32 %v51, %v143
    %v145 = vpop.f32.mrf.mxu0
    %146 = vmatprep.mubr.bf16.mxu0 0
    %147 = vmatmul.mubr.bf16.gmra.mxu0 %v93
    %v148 = vpop.f32.mrf.mxu0
    %v149 = vadd.f32 %v51, %v148
    %v150 = vpop.f32.mrf.mxu0
    %v151 = vpop.f32.mrf.mxu0
    %v152 = vadd.f32 %v51, %v151
    %v153 = vpop.f32.mrf.mxu0
    %154 = vmatprep.mubr.bf16.mxu0 0
    %155 = vmatmul.mubr.bf16.gmra.mxu0 %v96
    %v156 = vpop.f32.mrf.mxu0
    %v157 = vadd.f32 %v51, %v156
    %v158 = vpop.f32.mrf.mxu0
    %v159 = vpop.f32.mrf.mxu0
    %v160 = vadd.f32 %v51, %v159
    %v161 = vpop.f32.mrf.mxu0
    %162 = vdwg.mxu0
    %v163 = vlaneseq
    %v164 = vand.u32 %v163, 127
    %vm165 = vcmp.lt.s32.totalorder %v164, 0
    %v166 = vsub.s32 0, %v164
    %v167 = vsel %vm165, %v166, %v164
    %v168 = vshrl.u32 %v167, 5
    %v169 = vand.u32 %v167, 31
    %v170 = vsub.s32 0, %v169
    %v171 = vsel %vm165, %v170, %v169
    %vm172 = vcmp.ne.s32.totalorder %v171, 0
    %vm173 = vcmp.lt.s32.totalorder %v171, 0
    %vm174 = vmand %vm173, %vm172
    %v175 = vadd.s32 %v171, 32
    %v176 = vsel %vm174, %v175, %v171
    %vm177 = vcmp.lt.s32.totalorder %v176, 16
    %vm178 = vcmp.ge.s32.totalorder %v164, 64
    %vm179 = vcmp.lt.s32.totalorder %v164, 96
    %vm180 = vmand %vm178, %vm179
    %vm181 = vcmp.lt.s32.totalorder %v164, 16
    %v182 = vld [vmem:[%s2] sm:$0xff]
    %v183 = vld [vmem:[%s2 + $0x8] sm:$0xff]
    %v184 = vld [vmem:[%s2 + $0x10] sm:$0xff]
    %v185 = vld [vmem:[%s2 + $0x18] sm:$0xff]
    %v186 = vld [vmem:[%s2 + $0x20] sm:$0xff]
    %v187 = vld [vmem:[%s2 + $0x28] sm:$0xff]
    %v188 = vld [vmem:[%s2 + $0x30] sm:$0xff]
    %v189 = vld [vmem:[%s2 + $0x38] sm:$0xff]
    %v190 = vsub.s32 7, %v182
    %v191 = vsub.s32 7, %v183
    %v192 = vsub.s32 7, %v184
    %v193 = vsub.s32 7, %v185
    %v194 = vsub.s32 7, %v186
    %v195 = vsub.s32 7, %v187
    %v196 = vsub.s32 7, %v188
    %v197 = vsub.s32 7, %v189
    %198 = vset.pattern.permute.xlu0 0
    %199 = vperm.xlu0 %198, %v182
    %v200 = vpop.permute.xlu0 %199
    %201 = vset.pattern.permute.xlu0 0
    %202 = vperm.xlu0 %201, %v183
    %v203 = vpop.permute.xlu0 %202
    %204 = vset.pattern.permute.xlu0 0
    %205 = vperm.xlu0 %204, %v184
    %v206 = vpop.permute.xlu0 %205
    %207 = vset.pattern.permute.xlu0 0
    %208 = vperm.xlu0 %207, %v185
    %v209 = vpop.permute.xlu0 %208
    %210 = vset.pattern.permute.xlu0 0
    %211 = vperm.xlu0 %210, %v186
    %v212 = vpop.permute.xlu0 %211
    %213 = vset.pattern.permute.xlu0 0
    %214 = vperm.xlu0 %213, %v187
    %v215 = vpop.permute.xlu0 %214
    %216 = vset.pattern.permute.xlu0 0
    %217 = vperm.xlu0 %216, %v188
    %v218 = vpop.permute.xlu0 %217
    %219 = vset.pattern.permute.xlu0 0
    %220 = vperm.xlu0 %219, %v189
    %v221 = vpop.permute.xlu0 %220
    %222 = vset.pattern.permute.xlu0 0
    %223 = vperm.xlu0 %222, %v190
    %v224 = vpop.permute.xlu0 %223
    %225 = vset.pattern.permute.xlu0 0
    %226 = vperm.xlu0 %225, %v191
    %v227 = vpop.permute.xlu0 %226
    %228 = vset.pattern.permute.xlu0 0
    %229 = vperm.xlu0 %228, %v192
    %v230 = vpop.permute.xlu0 %229
    %231 = vset.pattern.permute.xlu0 0
    %232 = vperm.xlu0 %231, %v193
    %v233 = vpop.permute.xlu0 %232
    %234 = vset.pattern.permute.xlu0 0
    %235 = vperm.xlu0 %234, %v194
    %v236 = vpop.permute.xlu0 %235
    %237 = vset.pattern.permute.xlu0 0
    %238 = vperm.xlu0 %237, %v195
    %v239 = vpop.permute.xlu0 %238
    %240 = vset.pattern.permute.xlu0 0
    %241 = vperm.xlu0 %240, %v196
    %v242 = vpop.permute.xlu0 %241
    %243 = vset.pattern.permute.xlu0 0
    %244 = vperm.xlu0 %243, %v197
    %v245 = vpop.permute.xlu0 %244
    %v246 = vsel %vm181, %v200, %v224
    %v247 = vsel %vm181, %v203, %v227
    %v248 = vsel %vm181, %v206, %v230
    %v249 = vsel %vm181, %v209, %v233
    %v250 = vsel %vm181, %v212, %v236
    %v251 = vsel %vm181, %v215, %v239
    %v252 = vsel %vm181, %v218, %v242
    %v253 = vsel %vm181, %v221, %v245
    %v254 = vld [vmem:[%s1] sm:$0xff]
    %v255 = vld [vmem:[%s1 + $0x8] sm:$0xff]
    %v256 = vld [vmem:[%s1 + $0x10] sm:$0xff]
    %v257 = vld [vmem:[%s1 + $0x18] sm:$0xff]
    %v258 = vld [vmem:[%s1 + $0x20] sm:$0xff]
    %v259 = vld [vmem:[%s1 + $0x28] sm:$0xff]
    %v260 = vld [vmem:[%s1 + $0x30] sm:$0xff]
    %v261 = vld [vmem:[%s1 + $0x38] sm:$0xff]
    %262 = vset.pattern.permute.xlu0 0
    %263 = vperm.xlu0 %262, %v254
    %v264 = vpop.permute.xlu0 %263
    %265 = vset.pattern.permute.xlu0 0
    %266 = vperm.xlu0 %265, %v255
    %v267 = vpop.permute.xlu0 %266
    %268 = vset.pattern.permute.xlu0 0
    %269 = vperm.xlu0 %268, %v256
    %v270 = vpop.permute.xlu0 %269
    %271 = vset.pattern.permute.xlu0 0
    %272 = vperm.xlu0 %271, %v257
    %v273 = vpop.permute.xlu0 %272
    %274 = vset.pattern.permute.xlu0 0
    %275 = vperm.xlu0 %274, %v258
    %v276 = vpop.permute.xlu0 %275
    %277 = vset.pattern.permute.xlu0 0
    %278 = vperm.xlu0 %277, %v259
    %v279 = vpop.permute.xlu0 %278
    %280 = vset.pattern.permute.xlu0 0
    %281 = vperm.xlu0 %280, %v260
    %v282 = vpop.permute.xlu0 %281
    %283 = vset.pattern.permute.xlu0 0
    %284 = vperm.xlu0 %283, %v261
    %v285 = vpop.permute.xlu0 %284
    %vm286 = vcmp.gt.s32.totalorder %v264, %v246
    %vm287 = vcmp.gt.s32.totalorder %v267, %v247
    %vm288 = vcmp.gt.s32.totalorder %v270, %v248
    %vm289 = vcmp.gt.s32.totalorder %v273, %v249
    %vm290 = vcmp.gt.s32.totalorder %v276, %v250
    %vm291 = vcmp.gt.s32.totalorder %v279, %v251
    %vm292 = vcmp.gt.s32.totalorder %v282, %v252
    %vm293 = vcmp.gt.s32.totalorder %v285, %v253
    %v294 = vld [vmem:[%s4] sm:$0xf]
    %v295 = vld [vmem:[%s4 + $0x4] sm:$0xf]
    %v296 = vld [vmem:[%s4 + $0x8] sm:$0xf]
    %v297 = vld [vmem:[%s4 + $0xc] sm:$0xf]
    %v298 = vsel %vm177, %v133, %v160
    %v303 = vunpack.c.l.b16 %v294
    %v304 = vunpack.c.l.b16 %v295
    %v305 = vunpack.c.l.b16 %v296
    %v306 = vunpack.c.l.b16 %v297
    %v307 = vpack.c.b16 %v304, %v303
    %v308 = vpack.c.b16 %v306, %v305
    %v312 = vsel %vm85, 0, 0
    %314 = vmatprep.subr.bf16.mxu0 0
    %315 = vmatpush1.bf16.msra.mxu0 0
    %316 = vmatprep.subr.bf16.mxu0 0
    %317 = vmatpush1.bf16.msra.mxu0 0
    %318 = vmatprep.subr.bf16.mxu0 0
    %319 = vmatpush1.bf16.msra.mxu0 0
    %320 = vmatprep.subr.bf16.mxu0 0
    %321 = vmatpush1.bf16.msra.mxu0 0
    %322 = vmatprep.subr.bf16.mxu0 0
    %323 = vmatpush1.bf16.msra.mxu0 0
    %324 = vmatprep.subr.bf16.mxu0 0
    %325 = vmatpush1.bf16.msra.mxu0 0
    %326 = vmatprep.subr.bf16.mxu0 0
    %327 = vmatpush1.bf16.msra.mxu0 %v308
    %328 = vmatprep.subr.bf16.mxu0 0
    %329 = vmatpush1.bf16.msra.mxu0 %v307
    %330 = vmatprep.subr.bf16.mxu0 0
    %331 = vmatpush2.bf16.msra.mxu0 0
    %332 = vmatprep.subr.bf16.mxu0 0
    %333 = vmatpush2.bf16.msra.mxu0 0
    %334 = vmatprep.subr.bf16.mxu0 0
    %335 = vmatpush2.bf16.msra.mxu0 0
    %336 = vmatprep.subr.bf16.mxu0 0
    %337 = vmatpush2.bf16.msra.mxu0 0
    %338 = vmatprep.subr.bf16.mxu0 0
    %339 = vmatpush2.bf16.msra.mxu0 0
    %340 = vmatprep.subr.bf16.mxu0 0
    %341 = vmatpush2.bf16.msra.mxu0 0
    %342 = vmatprep.subr.bf16.mxu0 0
    %343 = vmatpush2.bf16.msra.mxu0 0
    %344 = vmatprep.subr.bf16.mxu0 0
    %345 = vmatpush2.bf16.msra.mxu0 0
    %346 = vmatprep.mubr.bf16.mxu0 0
    %347 = vmatmul.mubr.bf16.gmra.mxu0 %v312
    %v348 = vpop.f32.mrf.mxu0
    %v349 = vadd.f32 %v298, %v348
    %v350 = vpop.f32.mrf.mxu0
    %v351 = vpop.f32.mrf.mxu0
    %v352 = vpop.f32.mrf.mxu0
    %353 = vdwg.mxu0
    %v354 = vtanh.pop %v349
    %v355 = vxor.u32 %v349, 2147483648
    %v356 = vmul.f32 %v355, 1.442695
    %v357 = vpow.pop %v356
    %v358 = vadd.f32 %v357, 1.0
    %v359 = vrcp.pop %v358
    %v360 = vmul.f32 1.0, %v359
    %v361 = vsel %vm180, %v354, %v360
    %v362 = vmul.f32 %v361, 0.0
    %364 = vrot.lane.b32.xlu0 %v361, 64
    %v365 = vpop.permute.xlu0 %364
    %v367 = vmul.f32 %v361, %v365
    %369 = vrot.lane.b32.xlu0 %v367, 32
    %v370 = vpop.permute.xlu0 %369
    %v372 = vadd.f32 %v362, %v370
    %v373 = vtanh.pop %v372
    %375 = vrot.lane.b32.xlu0 %v373, 64
    %v376 = vpop.permute.xlu0 %375
    %v378 = vmul.f32 %v361, %v376
    %380 = vrot.lane.b32.xlu0 %v378, 32
    %v381 = vpop.permute.xlu0 %380
    %v383 = vsel %vm286, %v381, 0.0
    %385 = vrot.lane.b32.xlu0 %v372, 96
    %v386 = vpop.permute.xlu0 %385
    %v388 = vsel %vm286, %v386, 0.0
    %389 = vst.msk [vmem:[#allocation2] sm:$0xff] %vm85, %v383
    %v390 = vsel %vm177, %v136, %v157
    %v391 = vpack.c.bf16 %v383, %v383
    %v393 = vsel %vm85, %v391, 0
    %395 = vmatprep.subr.bf16.mxu0 0
    %396 = vmatpush1.bf16.msra.mxu0 0
    %397 = vmatprep.subr.bf16.mxu0 0
    %398 = vmatpush1.bf16.msra.mxu0 0
    %399 = vmatprep.subr.bf16.mxu0 0
    %400 = vmatpush1.bf16.msra.mxu0 0
    %401 = vmatprep.subr.bf16.mxu0 0
    %402 = vmatpush1.bf16.msra.mxu0 0
    %403 = vmatprep.subr.bf16.mxu0 0
    %404 = vmatpush1.bf16.msra.mxu0 0
    %405 = vmatprep.subr.bf16.mxu0 0
    %406 = vmatpush1.bf16.msra.mxu0 0
    %407 = vmatprep.subr.bf16.mxu0 0
    %408 = vmatpush1.bf16.msra.mxu0 %v308
    %409 = vmatprep.subr.bf16.mxu0 0
    %410 = vmatpush1.bf16.msra.mxu0 %v307
    %411 = vmatprep.subr.bf16.mxu0 0
    %412 = vmatpush2.bf16.msra.mxu0 0
    %413 = vmatprep.subr.bf16.mxu0 0
    %414 = vmatpush2.bf16.msra.mxu0 0
    %415 = vmatprep.subr.bf16.mxu0 0
    %416 = vmatpush2.bf16.msra.mxu0 0
    %417 = vmatprep.subr.bf16.mxu0 0
    %418 = vmatpush2.bf16.msra.mxu0 0
    %419 = vmatprep.subr.bf16.mxu0 0
    %420 = vmatpush2.bf16.msra.mxu0 0
    %421 = vmatprep.subr.bf16.mxu0 0
    %422 = vmatpush2.bf16.msra.mxu0 0
    %423 = vmatprep.subr.bf16.mxu0 0
    %424 = vmatpush2.bf16.msra.mxu0 0
    %425 = vmatprep.subr.bf16.mxu0 0
    %426 = vmatpush2.bf16.msra.mxu0 0
    %427 = vmatprep.mubr.bf16.mxu0 0
    %428 = vmatmul.mubr.bf16.gmra.mxu0 %v393
    %v429 = vpop.f32.mrf.mxu0
    %v430 = vadd.f32 %v390, %v429
    %v431 = vpop.f32.mrf.mxu0
    %v432 = vpop.f32.mrf.mxu0
    %v433 = vpop.f32.mrf.mxu0
    %434 = vdwg.mxu0
    %v435 = vtanh.pop %v430
    %v436 = vxor.u32 %v430, 2147483648
    %v437 = vmul.f32 %v436, 1.442695
    %v438 = vpow.pop %v437
    %v439 = vadd.f32 %v438, 1.0
    %v440 = vrcp.pop %v439
    %v441 = vmul.f32 1.0, %v440
    %v442 = vsel %vm180, %v435, %v441
    %444 = vrot.lane.b32.xlu0 %v388, 32
    %v445 = vpop.permute.xlu0 %444
    %v447 = vmul.f32 %v442, %v445
    %449 = vrot.lane.b32.xlu0 %v442, 64
    %v450 = vpop.permute.xlu0 %449
    %v452 = vmul.f32 %v442, %v450
    %454 = vrot.lane.b32.xlu0 %v452, 32
    %v455 = vpop.permute.xlu0 %454
    %v457 = vadd.f32 %v447, %v455
    %v458 = vtanh.pop %v457
    %460 = vrot.lane.b32.xlu0 %v458, 64
    %v461 = vpop.permute.xlu0 %460
    %v463 = vmul.f32 %v442, %v461
    %465 = vrot.lane.b32.xlu0 %v463, 32
    %v466 = vpop.permute.xlu0 %465
    %v468 = vsel %vm287, %v466, %v383
    %470 = vrot.lane.b32.xlu0 %v457, 96
    %v471 = vpop.permute.xlu0 %470
    %v473 = vsel %vm287, %v471, %v388
    %v474 = vsel %vm287, %v466, 0.0
    %475 = vst.msk [vmem:[#allocation2 + $0x8] sm:$0xff] %vm85, %v474
    %v476 = vsel %vm177, %v141, %v152
    %v477 = vpack.c.bf16 %v468, %v468
    %v479 = vsel %vm85, %v477, 0
    %481 = vmatprep.subr.bf16.mxu0 0
    %482 = vmatpush1.bf16.msra.mxu0 0
    %483 = vmatprep.subr.bf16.mxu0 0
    %484 = vmatpush1.bf16.msra.mxu0 0
    %485 = vmatprep.subr.bf16.mxu0 0
    %486 = vmatpush1.bf16.msra.mxu0 0
    %487 = vmatprep.subr.bf16.mxu0 0
    %488 = vmatpush1.bf16.msra.mxu0 0
    %489 = vmatprep.subr.bf16.mxu0 0
    %490 = vmatpush1.bf16.msra.mxu0 0
    %491 = vmatprep.subr.bf16.mxu0 0
    %492 = vmatpush1.bf16.msra.mxu0 0
    %493 = vmatprep.subr.bf16.mxu0 0
    %494 = vmatpush1.bf16.msra.mxu0 %v308
    %495 = vmatprep.subr.bf16.mxu0 0
    %496 = vmatpush1.bf16.msra.mxu0 %v307
    %497 = vmatprep.subr.bf16.mxu0 0
    %498 = vmatpush2.bf16.msra.mxu0 0
    %499 = vmatprep.subr.bf16.mxu0 0
    %500 = vmatpush2.bf16.msra.mxu0 0
    %501 = vmatprep.subr.bf16.mxu0 0
    %502 = vmatpush2.bf16.msra.mxu0 0
    %503 = vmatprep.subr.bf16.mxu0 0
    %504 = vmatpush2.bf16.msra.mxu0 0
    %505 = vmatprep.subr.bf16.mxu0 0
    %506 = vmatpush2.bf16.msra.mxu0 0
    %507 = vmatprep.subr.bf16.mxu0 0
    %508 = vmatpush2.bf16.msra.mxu0 0
    %509 = vmatprep.subr.bf16.mxu0 0
    %510 = vmatpush2.bf16.msra.mxu0 0
    %511 = vmatprep.subr.bf16.mxu0 0
    %512 = vmatpush2.bf16.msra.mxu0 0
    %513 = vmatprep.mubr.bf16.mxu0 0
    %514 = vmatmul.mubr.bf16.gmra.mxu0 %v479
    %v515 = vpop.f32.mrf.mxu0
    %v516 = vadd.f32 %v476, %v515
    %v517 = vpop.f32.mrf.mxu0
    %v518 = vpop.f32.mrf.mxu0
    %v519 = vpop.f32.mrf.mxu0
    %520 = vdwg.mxu0
    %v521 = vtanh.pop %v516
    %v522 = vxor.u32 %v516, 2147483648
    %v523 = vmul.f32 %v522, 1.442695
    %v524 = vpow.pop %v523
    %v525 = vadd.f32 %v524, 1.0
    %v526 = vrcp.pop %v525
    %v527 = vmul.f32 1.0, %v526
    %v528 = vsel %vm180, %v521, %v527
    %530 = vrot.lane.b32.xlu0 %v473, 32
    %v531 = vpop.permute.xlu0 %530
    %v533 = vmul.f32 %v528, %v531
    %535 = vrot.lane.b32.xlu0 %v528, 64
    %v536 = vpop.permute.xlu0 %535
    %v538 = vmul.f32 %v528, %v536
    %540 = vrot.lane.b32.xlu0 %v538, 32
    %v541 = vpop.permute.xlu0 %540
    %v543 = vadd.f32 %v533, %v541
    %v544 = vtanh.pop %v543
    %546 = vrot.lane.b32.xlu0 %v544, 64
    %v547 = vpop.permute.xlu0 %546
    %v549 = vmul.f32 %v528, %v547
    %551 = vrot.lane.b32.xlu0 %v549, 32
    %v552 = vpop.permute.xlu0 %551
    %v554 = vsel %vm288, %v552, %v468
    %556 = vrot.lane.b32.xlu0 %v543, 96
    %v557 = vpop.permute.xlu0 %556
    %v559 = vsel %vm288, %v557, %v473
    %v560 = vsel %vm288, %v552, 0.0
    %561 = vst.msk [vmem:[#allocation2 + $0x10] sm:$0xff] %vm85, %v560
    %v562 = vsel %vm177, %v144, %v149
    %v563 = vpack.c.bf16 %v554, %v554
    %v565 = vsel %vm85, %v563, 0
    %567 = vmatprep.subr.bf16.mxu0 0
    %568 = vmatpush1.bf16.msra.mxu0 0
    %569 = vmatprep.subr.bf16.mxu0 0
    %570 = vmatpush1.bf16.msra.mxu0 0
    %571 = vmatprep.subr.bf16.mxu0 0
    %572 = vmatpush1.bf16.msra.mxu0 0
    %573 = vmatprep.subr.bf16.mxu0 0
    %574 = vmatpush1.bf16.msra.mxu0 0
    %575 = vmatprep.subr.bf16.mxu0 0
    %576 = vmatpush1.bf16.msra.mxu0 0
    %577 = vmatprep.subr.bf16.mxu0 0
    %578 = vmatpush1.bf16.msra.mxu0 0
    %579 = vmatprep.subr.bf16.mxu0 0
    %580 = vmatpush1.bf16.msra.mxu0 %v308
    %581 = vmatprep.subr.bf16.mxu0 0
    %582 = vmatpush1.bf16.msra.mxu0 %v307
    %583 = vmatprep.subr.bf16.mxu0 0
    %584 = vmatpush2.bf16.msra.mxu0 0
    %585 = vmatprep.subr.bf16.mxu0 0
    %586 = vmatpush2.bf16.msra.mxu0 0
    %587 = vmatprep.subr.bf16.mxu0 0
    %588 = vmatpush2.bf16.msra.mxu0 0
    %589 = vmatprep.subr.bf16.mxu0 0
    %590 = vmatpush2.bf16.msra.mxu0 0
    %591 = vmatprep.subr.bf16.mxu0 0
    %592 = vmatpush2.bf16.msra.mxu0 0
    %593 = vmatprep.subr.bf16.mxu0 0
    %594 = vmatpush2.bf16.msra.mxu0 0
    %595 = vmatprep.subr.bf16.mxu0 0
    %596 = vmatpush2.bf16.msra.mxu0 0
    %597 = vmatprep.subr.bf16.mxu0 0
    %598 = vmatpush2.bf16.msra.mxu0 0
    %599 = vmatprep.mubr.bf16.mxu0 0
    %600 = vmatmul.mubr.bf16.gmra.mxu0 %v565
    %v601 = vpop.f32.mrf.mxu0
    %v602 = vadd.f32 %v562, %v601
    %v603 = vpop.f32.mrf.mxu0
    %v604 = vpop.f32.mrf.mxu0
    %v605 = vpop.f32.mrf.mxu0
    %606 = vdwg.mxu0
    %v607 = vtanh.pop %v602
    %v608 = vxor.u32 %v602, 2147483648
    %v609 = vmul.f32 %v608, 1.442695
    %v610 = vpow.pop %v609
    %v611 = vadd.f32 %v610, 1.0
    %v612 = vrcp.pop %v611
    %v613 = vmul.f32 1.0, %v612
    %v614 = vsel %vm180, %v607, %v613
    %616 = vrot.lane.b32.xlu0 %v559, 32
    %v617 = vpop.permute.xlu0 %616
    %v619 = vmul.f32 %v614, %v617
    %621 = vrot.lane.b32.xlu0 %v614, 64
    %v622 = vpop.permute.xlu0 %621
    %v624 = vmul.f32 %v614, %v622
    %626 = vrot.lane.b32.xlu0 %v624, 32
    %v627 = vpop.permute.xlu0 %626
    %v629 = vadd.f32 %v619, %v627
    %v630 = vtanh.pop %v629
    %632 = vrot.lane.b32.xlu0 %v630, 64
    %v633 = vpop.permute.xlu0 %632
    %v635 = vmul.f32 %v614, %v633
    %637 = vrot.lane.b32.xlu0 %v635, 32
    %v638 = vpop.permute.xlu0 %637
    %v640 = vsel %vm289, %v638, %v554
    %642 = vrot.lane.b32.xlu0 %v629, 96
    %v643 = vpop.permute.xlu0 %642
    %v645 = vsel %vm289, %v643, %v559
    %v646 = vsel %vm289, %v638, 0.0
    %647 = vst.msk [vmem:[#allocation2 + $0x18] sm:$0xff] %vm85, %v646
    %v648 = vsel %vm177, %v149, %v144
    %v649 = vpack.c.bf16 %v640, %v640
    %v651 = vsel %vm85, %v649, 0
    %653 = vmatprep.subr.bf16.mxu0 0
    %654 = vmatpush1.bf16.msra.mxu0 0
    %655 = vmatprep.subr.bf16.mxu0 0
    %656 = vmatpush1.bf16.msra.mxu0 0
    %657 = vmatprep.subr.bf16.mxu0 0
    %658 = vmatpush1.bf16.msra.mxu0 0
    %659 = vmatprep.subr.bf16.mxu0 0
    %660 = vmatpush1.bf16.msra.mxu0 0
    %661 = vmatprep.subr.bf16.mxu0 0
    %662 = vmatpush1.bf16.msra.mxu0 0
    %663 = vmatprep.subr.bf16.mxu0 0
    %664 = vmatpush1.bf16.msra.mxu0 0
    %665 = vmatprep.subr.bf16.mxu0 0
    %666 = vmatpush1.bf16.msra.mxu0 %v308
    %667 = vmatprep.subr.bf16.mxu0 0
    %668 = vmatpush1.bf16.msra.mxu0 %v307
    %669 = vmatprep.subr.bf16.mxu0 0
    %670 = vmatpush2.bf16.msra.mxu0 0
    %671 = vmatprep.subr.bf16.mxu0 0
    %672 = vmatpush2.bf16.msra.mxu0 0
    %673 = vmatprep.subr.bf16.mxu0 0
    %674 = vmatpush2.bf16.msra.mxu0 0
    %675 = vmatprep.subr.bf16.mxu0 0
    %676 = vmatpush2.bf16.msra.mxu0 0
    %677 = vmatprep.subr.bf16.mxu0 0
    %678 = vmatpush2.bf16.msra.mxu0 0
    %679 = vmatprep.subr.bf16.mxu0 0
    %680 = vmatpush2.bf16.msra.mxu0 0
    %681 = vmatprep.subr.bf16.mxu0 0
    %682 = vmatpush2.bf16.msra.mxu0 0
    %683 = vmatprep.subr.bf16.mxu0 0
    %684 = vmatpush2.bf16.msra.mxu0 0
    %685 = vmatprep.mubr.bf16.mxu0 0
    %686 = vmatmul.mubr.bf16.gmra.mxu0 %v651
    %v687 = vpop.f32.mrf.mxu0
    %v688 = vadd.f32 %v648, %v687
    %v689 = vpop.f32.mrf.mxu0
    %v690 = vpop.f32.mrf.mxu0
    %v691 = vpop.f32.mrf.mxu0
    %692 = vdwg.mxu0
    %v693 = vtanh.pop %v688
    %v694 = vxor.u32 %v688, 2147483648
    %v695 = vmul.f32 %v694, 1.442695
    %v696 = vpow.pop %v695
    %v697 = vadd.f32 %v696, 1.0
    %v698 = vrcp.pop %v697
    %v699 = vmul.f32 1.0, %v698
    %v700 = vsel %vm180, %v693, %v699
    %702 = vrot.lane.b32.xlu0 %v645, 32
    %v703 = vpop.permute.xlu0 %702
    %v705 = vmul.f32 %v700, %v703
    %707 = vrot.lane.b32.xlu0 %v700, 64
    %v708 = vpop.permute.xlu0 %707
    %v710 = vmul.f32 %v700, %v708
    %712 = vrot.lane.b32.xlu0 %v710, 32
    %v713 = vpop.permute.xlu0 %712
    %v715 = vadd.f32 %v705, %v713
    %v716 = vtanh.pop %v715
    %718 = vrot.lane.b32.xlu0 %v716, 64
    %v719 = vpop.permute.xlu0 %718
    %v721 = vmul.f32 %v700, %v719
    %723 = vrot.lane.b32.xlu0 %v721, 32
    %v724 = vpop.permute.xlu0 %723
    %v726 = vsel %vm290, %v724, %v640
    %728 = vrot.lane.b32.xlu0 %v715, 96
    %v729 = vpop.permute.xlu0 %728
    %v731 = vsel %vm290, %v729, %v645
    %v732 = vsel %vm290, %v724, 0.0
    %733 = vst.msk [vmem:[#allocation2 + $0x20] sm:$0xff] %vm85, %v732
    %v734 = vsel %vm177, %v152, %v141
    %v735 = vpack.c.bf16 %v726, %v726
    %v737 = vsel %vm85, %v735, 0
    %739 = vmatprep.subr.bf16.mxu0 0
    %740 = vmatpush1.bf16.msra.mxu0 0
    %741 = vmatprep.subr.bf16.mxu0 0
    %742 = vmatpush1.bf16.msra.mxu0 0
    %743 = vmatprep.subr.bf16.mxu0 0
    %744 = vmatpush1.bf16.msra.mxu0 0
    %745 = vmatprep.subr.bf16.mxu0 0
    %746 = vmatpush1.bf16.msra.mxu0 0
    %747 = vmatprep.subr.bf16.mxu0 0
    %748 = vmatpush1.bf16.msra.mxu0 0
    %749 = vmatprep.subr.bf16.mxu0 0
    %750 = vmatpush1.bf16.msra.mxu0 0
    %751 = vmatprep.subr.bf16.mxu0 0
    %752 = vmatpush1.bf16.msra.mxu0 %v308
    %753 = vmatprep.subr.bf16.mxu0 0
    %754 = vmatpush1.bf16.msra.mxu0 %v307
    %755 = vmatprep.subr.bf16.mxu0 0
    %756 = vmatpush2.bf16.msra.mxu0 0
    %757 = vmatprep.subr.bf16.mxu0 0
    %758 = vmatpush2.bf16.msra.mxu0 0
    %759 = vmatprep.subr.bf16.mxu0 0
    %760 = vmatpush2.bf16.msra.mxu0 0
    %761 = vmatprep.subr.bf16.mxu0 0
    %762 = vmatpush2.bf16.msra.mxu0 0
    %763 = vmatprep.subr.bf16.mxu0 0
    %764 = vmatpush2.bf16.msra.mxu0 0
    %765 = vmatprep.subr.bf16.mxu0 0
    %766 = vmatpush2.bf16.msra.mxu0 0
    %767 = vmatprep.subr.bf16.mxu0 0
    %768 = vmatpush2.bf16.msra.mxu0 0
    %769 = vmatprep.subr.bf16.mxu0 0
    %770 = vmatpush2.bf16.msra.mxu0 0
    %771 = vmatprep.mubr.bf16.mxu0 0
    %772 = vmatmul.mubr.bf16.gmra.mxu0 %v737
    %v773 = vpop.f32.mrf.mxu0
    %v774 = vadd.f32 %v734, %v773
    %v775 = vpop.f32.mrf.mxu0
    %v776 = vpop.f32.mrf.mxu0
    %v777 = vpop.f32.mrf.mxu0
    %778 = vdwg.mxu0
    %v779 = vtanh.pop %v774
    %v780 = vxor.u32 %v774, 2147483648
    %v781 = vmul.f32 %v780, 1.442695
    %v782 = vpow.pop %v781
    %v783 = vadd.f32 %v782, 1.0
    %v784 = vrcp.pop %v783
    %v785 = vmul.f32 1.0, %v784
    %v786 = vsel %vm180, %v779, %v785
    %788 = vrot.lane.b32.xlu0 %v731, 32
    %v789 = vpop.permute.xlu0 %788
    %v791 = vmul.f32 %v786, %v789
    %793 = vrot.lane.b32.xlu0 %v786, 64
    %v794 = vpop.permute.xlu0 %793
    %v796 = vmul.f32 %v786, %v794
    %798 = vrot.lane.b32.xlu0 %v796, 32
    %v799 = vpop.permute.xlu0 %798
    %v801 = vadd.f32 %v791, %v799
    %v802 = vtanh.pop %v801
    %804 = vrot.lane.b32.xlu0 %v802, 64
    %v805 = vpop.permute.xlu0 %804
    %v807 = vmul.f32 %v786, %v805
    %809 = vrot.lane.b32.xlu0 %v807, 32
    %v810 = vpop.permute.xlu0 %809
    %v812 = vsel %vm291, %v810, %v726
    %814 = vrot.lane.b32.xlu0 %v801, 96
    %v815 = vpop.permute.xlu0 %814
    %v817 = vsel %vm291, %v815, %v731
    %v818 = vsel %vm291, %v810, 0.0
    %819 = vst.msk [vmem:[#allocation2 + $0x28] sm:$0xff] %vm85, %v818
    %v820 = vsel %vm177, %v157, %v136
    %v821 = vpack.c.bf16 %v812, %v812
    %v823 = vsel %vm85, %v821, 0
    %825 = vmatprep.subr.bf16.mxu0 0
    %826 = vmatpush1.bf16.msra.mxu0 0
    %827 = vmatprep.subr.bf16.mxu0 0
    %828 = vmatpush1.bf16.msra.mxu0 0
    %829 = vmatprep.subr.bf16.mxu0 0
    %830 = vmatpush1.bf16.msra.mxu0 0
    %831 = vmatprep.subr.bf16.mxu0 0
    %832 = vmatpush1.bf16.msra.mxu0 0
    %833 = vmatprep.subr.bf16.mxu0 0
    %834 = vmatpush1.bf16.msra.mxu0 0
    %835 = vmatprep.subr.bf16.mxu0 0
    %836 = vmatpush1.bf16.msra.mxu0 0
    %837 = vmatprep.subr.bf16.mxu0 0
    %838 = vmatpush1.bf16.msra.mxu0 %v308
    %839 = vmatprep.subr.bf16.mxu0 0
    %840 = vmatpush1.bf16.msra.mxu0 %v307
    %841 = vmatprep.subr.bf16.mxu0 0
    %842 = vmatpush2.bf16.msra.mxu0 0
    %843 = vmatprep.subr.bf16.mxu0 0
    %844 = vmatpush2.bf16.msra.mxu0 0
    %845 = vmatprep.subr.bf16.mxu0 0
    %846 = vmatpush2.bf16.msra.mxu0 0
    %847 = vmatprep.subr.bf16.mxu0 0
    %848 = vmatpush2.bf16.msra.mxu0 0
    %849 = vmatprep.subr.bf16.mxu0 0
    %850 = vmatpush2.bf16.msra.mxu0 0
    %851 = vmatprep.subr.bf16.mxu0 0
    %852 = vmatpush2.bf16.msra.mxu0 0
    %853 = vmatprep.subr.bf16.mxu0 0
    %854 = vmatpush2.bf16.msra.mxu0 0
    %855 = vmatprep.subr.bf16.mxu0 0
    %856 = vmatpush2.bf16.msra.mxu0 0
    %857 = vmatprep.mubr.bf16.mxu0 0
    %858 = vmatmul.mubr.bf16.gmra.mxu0 %v823
    %v859 = vpop.f32.mrf.mxu0
    %v860 = vadd.f32 %v820, %v859
    %v861 = vpop.f32.mrf.mxu0
    %v862 = vpop.f32.mrf.mxu0
    %v863 = vpop.f32.mrf.mxu0
    %864 = vdwg.mxu0
    %v865 = vtanh.pop %v860
    %v866 = vxor.u32 %v860, 2147483648
    %v867 = vmul.f32 %v866, 1.442695
    %v868 = vpow.pop %v867
    %v869 = vadd.f32 %v868, 1.0
    %v870 = vrcp.pop %v869
    %v871 = vmul.f32 1.0, %v870
    %v872 = vsel %vm180, %v865, %v871
    %874 = vrot.lane.b32.xlu0 %v817, 32
    %v875 = vpop.permute.xlu0 %874
    %v877 = vmul.f32 %v872, %v875
    %879 = vrot.lane.b32.xlu0 %v872, 64
    %v880 = vpop.permute.xlu0 %879
    %v882 = vmul.f32 %v872, %v880
    %884 = vrot.lane.b32.xlu0 %v882, 32
    %v885 = vpop.permute.xlu0 %884
    %v887 = vadd.f32 %v877, %v885
    %v888 = vtanh.pop %v887
    %890 = vrot.lane.b32.xlu0 %v888, 64
    %v891 = vpop.permute.xlu0 %890
    %v893 = vmul.f32 %v872, %v891
    %895 = vrot.lane.b32.xlu0 %v893, 32
    %v896 = vpop.permute.xlu0 %895
    %v898 = vsel %vm292, %v896, %v812
    %900 = vrot.lane.b32.xlu0 %v887, 96
    %v901 = vpop.permute.xlu0 %900
    %v903 = vsel %vm292, %v901, %v817
    %v904 = vsel %vm292, %v896, 0.0
    %905 = vst.msk [vmem:[#allocation2 + $0x30] sm:$0xff] %vm85, %v904
    %v906 = vsel %vm177, %v160, %v133
    %v907 = vpack.c.bf16 %v898, %v898
    %v909 = vsel %vm85, %v907, 0
    %911 = vmatprep.subr.bf16.mxu0 0
    %912 = vmatpush1.bf16.msra.mxu0 0
    %913 = vmatprep.subr.bf16.mxu0 0
    %914 = vmatpush1.bf16.msra.mxu0 0
    %915 = vmatprep.subr.bf16.mxu0 0
    %916 = vmatpush1.bf16.msra.mxu0 0
    %917 = vmatprep.subr.bf16.mxu0 0
    %918 = vmatpush1.bf16.msra.mxu0 0
    %919 = vmatprep.subr.bf16.mxu0 0
    %920 = vmatpush1.bf16.msra.mxu0 0
    %921 = vmatprep.subr.bf16.mxu0 0
    %922 = vmatpush1.bf16.msra.mxu0 0
    %923 = vmatprep.subr.bf16.mxu0 0
    %924 = vmatpush1.bf16.msra.mxu0 %v308
    %925 = vmatprep.subr.bf16.mxu0 0
    %926 = vmatpush1.bf16.msra.mxu0 %v307
    %927 = vmatprep.subr.bf16.mxu0 0
    %928 = vmatpush2.bf16.msra.mxu0 0
    %929 = vmatprep.subr.bf16.mxu0 0
    %930 = vmatpush2.bf16.msra.mxu0 0
    %931 = vmatprep.subr.bf16.mxu0 0
    %932 = vmatpush2.bf16.msra.mxu0 0
    %933 = vmatprep.subr.bf16.mxu0 0
    %934 = vmatpush2.bf16.msra.mxu0 0
    %935 = vmatprep.subr.bf16.mxu0 0
    %936 = vmatpush2.bf16.msra.mxu0 0
    %937 = vmatprep.subr.bf16.mxu0 0
    %938 = vmatpush2.bf16.msra.mxu0 0
    %939 = vmatprep.subr.bf16.mxu0 0
    %940 = vmatpush2.bf16.msra.mxu0 0
    %941 = vmatprep.subr.bf16.mxu0 0
    %942 = vmatpush2.bf16.msra.mxu0 0
    %943 = vmatprep.mubr.bf16.mxu0 0
    %944 = vmatmul.mubr.bf16.gmra.mxu0 %v909
    %v945 = vpop.f32.mrf.mxu0
    %v946 = vadd.f32 %v906, %v945
    %v947 = vpop.f32.mrf.mxu0
    %v948 = vpop.f32.mrf.mxu0
    %v949 = vpop.f32.mrf.mxu0
    %950 = vdwg.mxu0
    %v951 = vtanh.pop %v946
    %v952 = vxor.u32 %v946, 2147483648
    %v953 = vmul.f32 %v952, 1.442695
    %v954 = vpow.pop %v953
    %v955 = vadd.f32 %v954, 1.0
    %v956 = vrcp.pop %v955
    %v957 = vmul.f32 1.0, %v956
    %v958 = vsel %vm180, %v951, %v957
    %960 = vrot.lane.b32.xlu0 %v903, 32
    %v961 = vpop.permute.xlu0 %960
    %v963 = vmul.f32 %v958, %v961
    %965 = vrot.lane.b32.xlu0 %v958, 64
    %v966 = vpop.permute.xlu0 %965
    %v968 = vmul.f32 %v958, %v966
    %970 = vrot.lane.b32.xlu0 %v968, 32
    %v971 = vpop.permute.xlu0 %970
    %v973 = vadd.f32 %v963, %v971
    %v974 = vtanh.pop %v973
    %976 = vrot.lane.b32.xlu0 %v974, 64
    %v977 = vpop.permute.xlu0 %976
    %v979 = vmul.f32 %v958, %v977
    %981 = vrot.lane.b32.xlu0 %v979, 32
    %v982 = vpop.permute.xlu0 %981
    %v984 = vsel %vm293, %v982, 0.0
    %985 = vst.msk [vmem:[#allocation2 + $0x38] sm:$0xff] %vm85, %v984
    %v986 = vld [vmem:[#allocation2] sm:$0xff]
    %v987 = vld [vmem:[#allocation2 + $0x8] sm:$0xff]
    %v988 = vld [vmem:[#allocation2 + $0x10] sm:$0xff]
    %v989 = vld [vmem:[#allocation2 + $0x18] sm:$0xff]
    %v990 = vld [vmem:[#allocation2 + $0x20] sm:$0xff]
    %v991 = vld [vmem:[#allocation2 + $0x28] sm:$0xff]
    %v992 = vld [vmem:[#allocation2 + $0x30] sm:$0xff]
    %v993 = vld [vmem:[#allocation2 + $0x38] sm:$0xff]
    %v994 = vpack.c.bf16 %v987, %v986
    %v995 = vpack.c.bf16 %v989, %v988
    %v996 = vpack.c.bf16 %v991, %v990
    %v997 = vpack.c.bf16 %v993, %v992
    %v998 = vld [vmem:[%s6] sm:$0xf]
    %v999 = vld [vmem:[%s6 + $0x4] sm:$0xf]
    %v1000 = vld [vmem:[%s6 + $0x8] sm:$0xf]
    %v1001 = vld [vmem:[%s6 + $0xc] sm:$0xf]
    %v1002 = vld [vmem:[%s8] sm:$0x1]
    %v1004 = vlaneseq
    %v1005 = vshrl.u32 %v1004, 7
    %v1006 = vsub.s32 0, %v1005
    %v1007 = vrot.slane %v1002, %v1006
    %v1013 = vunpack.c.l.b16 %v998
    %v1014 = vunpack.c.l.b16 %v999
    %v1015 = vunpack.c.l.b16 %v1000
    %v1016 = vunpack.c.l.b16 %v1001
    %v1017 = vpack.c.b16 %v1014, %v1013
    %v1018 = vpack.c.b16 %v1016, %v1015
    %v1022 = vsel %vm85, %v994, 0
    %v1025 = vsel %vm85, %v995, 0
    %v1028 = vsel %vm85, %v996, 0
    %v1031 = vsel %vm85, %v997, 0
    %1033 = vmatprep.subr.bf16.mxu0 0
    %1034 = vmatpush1.bf16.msra.mxu0 0
    %1035 = vmatprep.subr.bf16.mxu0 0
    %1036 = vmatpush1.bf16.msra.mxu0 0
    %1037 = vmatprep.subr.bf16.mxu0 0
    %1038 = vmatpush1.bf16.msra.mxu0 0
    %1039 = vmatprep.subr.bf16.mxu0 0
    %1040 = vmatpush1.bf16.msra.mxu0 0
    %1041 = vmatprep.subr.bf16.mxu0 0
    %1042 = vmatpush1.bf16.msra.mxu0 0
    %1043 = vmatprep.subr.bf16.mxu0 0
    %1044 = vmatpush1.bf16.msra.mxu0 0
    %1045 = vmatprep.subr.bf16.mxu0 0
    %1046 = vmatpush1.bf16.msra.mxu0 %v1018
    %1047 = vmatprep.subr.bf16.mxu0 0
    %1048 = vmatpush1.bf16.msra.mxu0 %v1017
    %1049 = vmatprep.subr.bf16.mxu0 0
    %1050 = vmatpush2.bf16.msra.mxu0 0
    %1051 = vmatprep.subr.bf16.mxu0 0
    %1052 = vmatpush2.bf16.msra.mxu0 0
    %1053 = vmatprep.subr.bf16.mxu0 0
    %1054 = vmatpush2.bf16.msra.mxu0 0
    %1055 = vmatprep.subr.bf16.mxu0 0
    %1056 = vmatpush2.bf16.msra.mxu0 0
    %1057 = vmatprep.subr.bf16.mxu0 0
    %1058 = vmatpush2.bf16.msra.mxu0 0
    %1059 = vmatprep.subr.bf16.mxu0 0
    %1060 = vmatpush2.bf16.msra.mxu0 0
    %1061 = vmatprep.subr.bf16.mxu0 0
    %1062 = vmatpush2.bf16.msra.mxu0 0
    %1063 = vmatprep.subr.bf16.mxu0 0
    %1064 = vmatpush2.bf16.msra.mxu0 0
    %1065 = vmatprep.mubr.bf16.mxu0 0
    %1066 = vmatmul.mubr.bf16.gmra.mxu0 %v1022
    %v1067 = vpop.f32.mrf.mxu0
    %v1068 = vadd.f32 %v1007, %v1067
    %v1069 = vpop.f32.mrf.mxu0
    %v1070 = vpop.f32.mrf.mxu0
    %v1071 = vadd.f32 %v1007, %v1070
    %v1072 = vpop.f32.mrf.mxu0
    %1073 = vmatprep.mubr.bf16.mxu0 0
    %1074 = vmatmul.mubr.bf16.gmra.mxu0 %v1025
    %v1075 = vpop.f32.mrf.mxu0
    %v1076 = vadd.f32 %v1007, %v1075
    %v1077 = vpop.f32.mrf.mxu0
    %v1078 = vpop.f32.mrf.mxu0
    %v1079 = vadd.f32 %v1007, %v1078
    %v1080 = vpop.f32.mrf.mxu0
    %1081 = vmatprep.mubr.bf16.mxu0 0
    %1082 = vmatmul.mubr.bf16.gmra.mxu0 %v1028
    %v1083 = vpop.f32.mrf.mxu0
    %v1084 = vadd.f32 %v1007, %v1083
    %v1085 = vpop.f32.mrf.mxu0
    %v1086 = vpop.f32.mrf.mxu0
    %v1087 = vadd.f32 %v1007, %v1086
    %v1088 = vpop.f32.mrf.mxu0
    %1089 = vmatprep.mubr.bf16.mxu0 0
    %1090 = vmatmul.mubr.bf16.gmra.mxu0 %v1031
    %v1091 = vpop.f32.mrf.mxu0
    %v1092 = vadd.f32 %v1007, %v1091
    %v1093 = vpop.f32.mrf.mxu0
    %v1094 = vpop.f32.mrf.mxu0
    %v1095 = vadd.f32 %v1007, %v1094
    %v1096 = vpop.f32.mrf.mxu0
    %1097 = vdwg.mxu0
    %v1098 = vld [vmem:[%s7] sm:$0xf]
    %v1099 = vld [vmem:[%s7 + $0x4] sm:$0xf]
    %v1100 = vld [vmem:[%s7 + $0x8] sm:$0xf]
    %v1101 = vld [vmem:[%s7 + $0xc] sm:$0xf]
    %v1106 = vunpack.c.l.b16 %v1098
    %v1107 = vunpack.c.l.b16 %v1099
    %v1108 = vunpack.c.l.b16 %v1100
    %v1109 = vunpack.c.l.b16 %v1101
    %v1110 = vpack.c.b16 %v1107, %v1106
    %v1111 = vpack.c.b16 %v1109, %v1108
    %1114 = vmatprep.subr.bf16.mxu0 0
    %1115 = vmatpush1.bf16.msra.mxu0 0
    %1116 = vmatprep.subr.bf16.mxu0 0
    %1117 = vmatpush1.bf16.msra.mxu0 0
    %1118 = vmatprep.subr.bf16.mxu0 0
    %1119 = vmatpush1.bf16.msra.mxu0 0
    %1120 = vmatprep.subr.bf16.mxu0 0
    %1121 = vmatpush1.bf16.msra.mxu0 0
    %1122 = vmatprep.subr.bf16.mxu0 0
    %1123 = vmatpush1.bf16.msra.mxu0 0
    %1124 = vmatprep.subr.bf16.mxu0 0
    %1125 = vmatpush1.bf16.msra.mxu0 0
    %1126 = vmatprep.subr.bf16.mxu0 0
    %1127 = vmatpush1.bf16.msra.mxu0 %v1111
    %1128 = vmatprep.subr.bf16.mxu0 0
    %1129 = vmatpush1.bf16.msra.mxu0 %v1110
    %1130 = vmatprep.subr.bf16.mxu0 0
    %1131 = vmatpush2.bf16.msra.mxu0 0
    %1132 = vmatprep.subr.bf16.mxu0 0
    %1133 = vmatpush2.bf16.msra.mxu0 0
    %1134 = vmatprep.subr.bf16.mxu0 0
    %1135 = vmatpush2.bf16.msra.mxu0 0
    %1136 = vmatprep.subr.bf16.mxu0 0
    %1137 = vmatpush2.bf16.msra.mxu0 0
    %1138 = vmatprep.subr.bf16.mxu0 0
    %1139 = vmatpush2.bf16.msra.mxu0 0
    %1140 = vmatprep.subr.bf16.mxu0 0
    %1141 = vmatpush2.bf16.msra.mxu0 0
    %1142 = vmatprep.subr.bf16.mxu0 0
    %1143 = vmatpush2.bf16.msra.mxu0 0
    %1144 = vmatprep.subr.bf16.mxu0 0
    %1145 = vmatpush2.bf16.msra.mxu0 0
    %1146 = vmatprep.mubr.bf16.mxu0 0
    %1147 = vmatmul.mubr.bf16.gmra.mxu0 %v1022
    %v1148 = vpop.f32.mrf.mxu0
    %v1149 = vadd.f32 0.0, %v1148
    %v1150 = vpop.f32.mrf.mxu0
    %v1151 = vpop.f32.mrf.mxu0
    %v1152 = vadd.f32 0.0, %v1151
    %v1153 = vpop.f32.mrf.mxu0
    %1154 = vmatprep.mubr.bf16.mxu0 0
    %1155 = vmatmul.mubr.bf16.gmra.mxu0 %v1025
    %v1156 = vpop.f32.mrf.mxu0
    %v1157 = vadd.f32 0.0, %v1156
    %v1158 = vpop.f32.mrf.mxu0
    %v1159 = vpop.f32.mrf.mxu0
    %v1160 = vadd.f32 0.0, %v1159
    %v1161 = vpop.f32.mrf.mxu0
    %1162 = vmatprep.mubr.bf16.mxu0 0
    %1163 = vmatmul.mubr.bf16.gmra.mxu0 %v1028
    %v1164 = vpop.f32.mrf.mxu0
    %v1165 = vadd.f32 0.0, %v1164
    %v1166 = vpop.f32.mrf.mxu0
    %v1167 = vpop.f32.mrf.mxu0
    %v1168 = vadd.f32 0.0, %v1167
    %v1169 = vpop.f32.mrf.mxu0
    %1170 = vmatprep.mubr.bf16.mxu0 0
    %1171 = vmatmul.mubr.bf16.gmra.mxu0 %v1031
    %v1172 = vpop.f32.mrf.mxu0
    %v1173 = vadd.f32 0.0, %v1172
    %v1174 = vpop.f32.mrf.mxu0
    %v1175 = vpop.f32.mrf.mxu0
    %v1176 = vadd.f32 0.0, %v1175
    %v1177 = vpop.f32.mrf.mxu0
    %1178 = vdwg.mxu0
    %v1179 = vadd.f32 %v1068, %v1176
    %1180 = vst [vmem:[#allocation3] sm:$0xff] %v1179
    %v1181 = vadd.f32 %v1071, %v1173
    %1182 = vst [vmem:[#allocation3 + $0x8] sm:$0xff] %v1181
    %v1183 = vadd.f32 %v1076, %v1168
    %1184 = vst [vmem:[#allocation3 + $0x10] sm:$0xff] %v1183
    %v1185 = vadd.f32 %v1079, %v1165
    %1186 = vst [vmem:[#allocation3 + $0x18] sm:$0xff] %v1185
    %v1187 = vadd.f32 %v1084, %v1160
    %1188 = vst [vmem:[#allocation3 + $0x20] sm:$0xff] %v1187
    %v1189 = vadd.f32 %v1087, %v1157
    %1190 = vst [vmem:[#allocation3 + $0x28] sm:$0xff] %v1189
    %v1191 = vadd.f32 %v1092, %v1152
    %1192 = vst [vmem:[#allocation3 + $0x30] sm:$0xff] %v1191
    %v1193 = vadd.f32 %v1095, %v1149
    %1194 = vst [vmem:[#allocation3 + $0x38] sm:$0xff] %v1193
    // Predicated region
    $region38: #{tpu_custom_call.1} parent=1 // pred_check
      _
    $region39: #{tpu_custom_call.1} parent=1 // pred_check_branch
      %1196 = sbr.rel (0) target = $region41
    $region40: #{tpu_custom_call.1} parent=1 // pred_region
      %s1198 = ssub.s32 1024, 1024
      %1199 = vsyncadd [#allocation4], %s1198
      %s1200 = sshll.u32 [#allocation3], 4
      %s1201 = int_to_ptr.vmem [resolvable:$true] %s1200
      %1206 = dma.vmem_to_hbm [thread:$0]  %s1201, 1024, %s9, [#allocation4], 128, 128, 8
    $region41: #{tpu_custom_call.1} parent=1 // pred_fallthru
      _
    // Predicated region
    $region42: #{tpu_custom_call.1} parent=1 // pred_check
      _
    $region43: #{tpu_custom_call.1} parent=1 // pred_check_branch
      %1208 = sbr.rel (0) target = $region45
    $region44: #{tpu_custom_call.1} parent=1 // pred_region
      %1209 = dma.done [#allocation4], 1024
    $region45: #{tpu_custom_call.1} parent=1 // pred_fallthru
      _
    %1210 = vsyncpa [#allocation4], 1

</llo_original>
